<compile_context>
chip_gen: v7x
topology: tpu7x:2x2x1
jax: 0.10.0
libtpu: 0.0.40
codegen_flags: <defaults>
</compile_context>

<pallas_src>
import jax
import jax.numpy as jnp
from jax.experimental import pallas as pl
from jax.experimental.pallas import tpu as pltpu


def _round_up(n, m):
    return ((n + m - 1) // m) * m


# ----------------------------- Pallas kernels ------------------------------ #
def _coarse_kernel(xT_ref, pT_ref, aT_ref, w1_ref, b1_ref, w2_ref, b2_ref,
                   h2_ref, xp_acc):
    """Pooling (reduction over fine-node tiles) + both GraphConv layers.

    Transposed, lane-dense layout: everything is (channels, nodes).
    grid = (num_fine_tiles,), axis is an 'arbitrary' reduction axis.
    """
    f32 = jnp.float32
    bf16 = jnp.bfloat16
    t = pl.program_id(0)

    @pl.when(t == 0)
    def _init():
        xp_acc[...] = jnp.zeros_like(xp_acc)

    # pooling: edge-weighted scatter-add fine -> coarse, tiled over fine nodes
    #   xp^T += x^T[:, tile] @ P^T[tile, :]
    xp_acc[...] += jnp.dot(xT_ref[...], pT_ref[...], preferred_element_type=f32)

    @pl.when(t == pl.num_programs(0) - 1)
    def _finalize():
        aT = aT_ref[...]                                        # (Nc, Nc) bf16
        xpT = xp_acc[...]                                       # (CPi, Nc) f32

        # layer 1: GraphConv(Cin -> Cout); root+neighbor fused into one matmul
        agg1 = jnp.dot(xpT.astype(bf16), aT, preferred_element_type=f32)
        s1 = jnp.concatenate([xpT, agg1], axis=0).astype(bf16)  # (2*CPi, Nc)
        h1 = jnp.dot(w1_ref[...], s1, preferred_element_type=f32) + b1_ref[...]

        # layer 2: GraphConv(Cout -> Cout)
        agg2 = jnp.dot(h1.astype(bf16), aT, preferred_element_type=f32)
        s2 = jnp.concatenate([h1, agg2], axis=0).astype(bf16)   # (2*CPo, Nc)
        h2 = jnp.dot(w2_ref[...], s2, preferred_element_type=f32) + b2_ref[...]

        h2_ref[...] = h2.astype(h2_ref.dtype)                   # (CPo, Nc) bf16


def _unpool_kernel(h2_ref, uT_ref, out_ref):
    """Unpooling: out^T[:, tile] = h2^T @ U^T[:, tile]  (parallel over fine tiles)."""
    out_ref[...] = jnp.dot(h2_ref[...], uT_ref[...],
                           preferred_element_type=jnp.float32)


# ------------------------------- Wrapper ----------------------------------- #
def convblock5_forward(x, P, A, U, w1r, w1n, b1, w2r, w2n, b2, *, tile_nf=512):
    """_ConvBlock5 forward.

    x : (Nf, Cin) f32 fine-node features
    P : (Nc, Nf) dense pooling operator (dst, src) edge weights
    A : (Nc, Nc) dense point-point operator on the coarse graph
    U : (Nf, Nc) dense unpooling operator
    Returns (Nf, Cout) f32.
    """
    f32, bf16 = jnp.float32, jnp.bfloat16
    Nf, Cin = x.shape
    Nc = A.shape[0]
    Cout = w1r.shape[1]
    CPi = _round_up(Cin, 8)                  # channel padding -> full sublanes
    CPo = _round_up(Cout, 8)
    tile_nf = min(tile_nf, _round_up(Nf, 128))   # clamp tile to (padded) graph
    NfP = _round_up(Nf, tile_nf)             # fine-node padding -> whole tiles
    n_tiles = NfP // tile_nf

    # --- lane-dense transposed, zero-padded, bf16 operands -------------------
    xT = jnp.zeros((CPi, NfP), bf16).at[:Cin, :Nf].set(x.T.astype(bf16))
    PT = jnp.zeros((NfP, Nc), bf16).at[:Nf, :].set(P.T.astype(bf16))
    AT = A.T.astype(bf16)
    UT = jnp.zeros((Nc, NfP), bf16).at[:, :Nf].set(U.T.astype(bf16))

    def _pad_w(w, rows, cols):
        return jnp.zeros((rows, cols), f32).at[:w.shape[0], :w.shape[1]].set(
            w.astype(f32))

    # fused (root | neighbor) weights, transposed: h^T = W^T @ [x^T ; (A@x)^T] + b
    W1T = jnp.concatenate([_pad_w(w1r, CPi, CPo), _pad_w(w1n, CPi, CPo)],
                          axis=0).T.astype(bf16)                 # (CPo, 2*CPi)
    W2T = jnp.concatenate([_pad_w(w2r, CPo, CPo), _pad_w(w2n, CPo, CPo)],
                          axis=0).T.astype(bf16)                 # (CPo, 2*CPo)
    b1T = jnp.zeros((CPo, 1), f32).at[:Cout, 0].set(jnp.ravel(b1).astype(f32))
    b2T = jnp.zeros((CPo, 1), f32).at[:Cout, 0].set(jnp.ravel(b2).astype(f32))

    # --- call 1: pooling reduction + both GraphConv layers (coarse graph) ----
    h2T = pl.pallas_call(
        _coarse_kernel,
        out_shape=jax.ShapeDtypeStruct((CPo, Nc), bf16),
        grid_spec=pltpu.PrefetchScalarGridSpec(
            num_scalar_prefetch=0,
            grid=(n_tiles,),
            in_specs=[
                pl.BlockSpec((CPi, tile_nf), lambda t: (0, t)),   # x^T tile
                pl.BlockSpec((tile_nf, Nc), lambda t: (t, 0)),    # P^T tile
                pl.BlockSpec((Nc, Nc), lambda t: (0, 0)),         # A^T (resident)
                pl.BlockSpec((CPo, 2 * CPi), lambda t: (0, 0)),   # W1^T fused
                pl.BlockSpec((CPo, 1), lambda t: (0, 0)),         # b1
                pl.BlockSpec((CPo, 2 * CPo), lambda t: (0, 0)),   # W2^T fused
                pl.BlockSpec((CPo, 1), lambda t: (0, 0)),         # b2
            ],
            out_specs=pl.BlockSpec((CPo, Nc), lambda t: (0, 0)),
            scratch_shapes=[pltpu.VMEM((CPi, Nc), jnp.float32)],  # xp accumulator
        ),
        compiler_params=pltpu.CompilerParams(
            dimension_semantics=("arbitrary",)),
    )(xT, PT, AT, W1T, b1T, W2T, b2T)

    # --- call 2: unpooling, parallel over fine-node tiles ---------------------
    outT = pl.pallas_call(
        _unpool_kernel,
        out_shape=jax.ShapeDtypeStruct((CPo, NfP), f32),
        grid_spec=pltpu.PrefetchScalarGridSpec(
            num_scalar_prefetch=0,
            grid=(n_tiles,),
            in_specs=[
                pl.BlockSpec((CPo, Nc), lambda t: (0, 0)),        # h2^T (resident)
                pl.BlockSpec((Nc, tile_nf), lambda t: (0, t)),    # U^T tile
            ],
            out_specs=pl.BlockSpec((CPo, tile_nf), lambda t: (0, t)),
        ),
        compiler_params=pltpu.CompilerParams(
            dimension_semantics=("parallel",)),
    )(h2T, UT)

    # layout plumbing back to the module's (N, C) convention (outside the kernel)
    return outT[:Cout, :Nf].T


# ------------------------------ JAX glue ------------------------------------ #
def dense_from_edges(edge_index, edge_attr, n_dst, n_src):
    """Dense (dst, src) operator: out[d, s] += attr  for each edge (s -> d)."""
    src, dst = edge_index
    M = jnp.zeros((n_dst, n_src), jnp.float32)
    return M.at[dst, src].add(edge_attr.astype(jnp.float32))


def _ref_forward(x, P, A, U, w1r, w1n, b1, w2r, w2n, b2):
    """Pure-JAX reference in the original (N, C) orientation, tracking the
    kernel's bf16 quantization points (f32 accumulation)."""
    f32 = jnp.float32
    q = lambda a: a.astype(jnp.bfloat16).astype(f32)
    xp = q(P) @ q(x)                                             # pooling
    agg1 = q(A) @ q(xp)
    h1 = q(xp) @ q(w1r) + q(agg1) @ q(w1n) + jnp.ravel(b1)[None, :]
    agg2 = q(A) @ q(h1)
    h2 = q(h1) @ q(w2r) + q(agg2) @ q(w2n) + jnp.ravel(b2)[None, :]
    return q(U) @ q(h2)                                          # unpooling


# ------------------------------ Main / demo --------------------------------- #
if __name__ == "__main__":
    key = jax.random.PRNGKey(0)
    ks = jax.random.split(key, 10)

    N_FINE, N_COARSE = 1024, 128   # fine / coarse graph node counts
    C_IN, C_OUT = 4, 8             # in_channels, out_channels
    STRIDE = N_FINE // N_COARSE

    x = jax.random.normal(ks[0], (N_FINE, C_IN), jnp.float32)

    # graphPoolData['pooling']: fine node i pools into coarse node i // STRIDE.
    pool_src = jnp.arange(N_FINE, dtype=jnp.int32)
    pool_dst = pool_src // STRIDE
    pool_attr = jax.random.uniform(ks[1], (N_FINE,), jnp.float32, 0.5, 1.5)
    P = dense_from_edges((pool_src, pool_dst), pool_attr, N_COARSE, N_FINE)

    # graphData['pointPoint']: bidirectional ring on the coarse graph.
    pp_src = jnp.concatenate([jnp.arange(N_COARSE), jnp.arange(N_COARSE)]).astype(jnp.int32)
    pp_dst = jnp.concatenate([(jnp.arange(N_COARSE) + 1) % N_COARSE,
                              (jnp.arange(N_COARSE) - 1) % N_COARSE]).astype(jnp.int32)
    pp_attr = jax.random.uniform(ks[2], (2 * N_COARSE,), jnp.float32, 0.5, 1.5)
    A = dense_from_edges((pp_src, pp_dst), pp_attr, N_COARSE, N_COARSE)

    # graphPoolData['unpooling']: coarse node j unpools to fine nodes j*STRIDE..(j+1)*STRIDE-1.
    un_src = jnp.repeat(jnp.arange(N_COARSE, dtype=jnp.int32), STRIDE)
    un_dst = jnp.arange(N_FINE, dtype=jnp.int32)
    un_attr = jax.random.uniform(ks[3], (N_FINE,), jnp.float32, 0.5, 1.5)
    U = dense_from_edges((un_src, un_dst), un_attr, N_FINE, N_COARSE)

    # GraphConv parameters (root weight, neighbor weight, bias).
    w1r = jax.random.normal(ks[4], (C_IN, C_OUT), jnp.float32) * 0.1
    w1n = jax.random.normal(ks[5], (C_IN, C_OUT), jnp.float32) * 0.1
    b1 = jax.random.normal(ks[6], (C_OUT,), jnp.float32) * 0.1
    w2r = jax.random.normal(ks[7], (C_OUT, C_OUT), jnp.float32) * 0.1
    w2n = jax.random.normal(ks[8], (C_OUT, C_OUT), jnp.float32) * 0.1
    b2 = jax.random.normal(ks[9], (C_OUT,), jnp.float32) * 0.1

    out = jax.jit(convblock5_forward)(x, P, A, U, w1r, w1n, b1, w2r, w2n, b2)
    out = jax.block_until_ready(out)

    ref = _ref_forward(x, P, A, U, w1r, w1n, b1, w2r, w2n, b2)
    assert out.shape == (N_FINE, C_OUT), out.shape
    assert jnp.allclose(out, ref, atol=2e-3, rtol=2e-3), float(
        jnp.max(jnp.abs(out - ref)))

    print("KERNEL_OK")
</pallas_src>

<mosaic_0001>
module attributes {stable_mosaic.version = 11 : i64} {
  func.func @_unpool_kernel(%arg0: i32, %arg1: memref<8x128xbf16, #tpu.memory_space<vmem>>, %arg2: memref<128x512xbf16, #tpu.memory_space<vmem>>, %arg3: memref<8x512xf32, #tpu.memory_space<vmem>>) attributes {dimension_semantics = [#tpu.dimension_semantics<parallel>], iteration_bounds = array<i64: 2>, scalar_prefetch = 0 : i64, scratch_operands = 0 : i64, tpu.core_type = #tpu.core_type<tc>, window_params = [{pipeline_mode = #tpu.pipeline_mode<synchronous>, transform_indices = @transform_0, window_bounds = array<i64: 8, 128>}, {transform_indices = @transform_1, window_bounds = array<i64: 128, 512>}, {transform_indices = @transform_2, window_bounds = array<i64: 8, 512>}]} {
    %c0 = arith.constant 0 : index
    %c0_0 = arith.constant 0 : index
    %0 = vector.load %arg1[%c0, %c0_0] : memref<8x128xbf16, #tpu.memory_space<vmem>>, vector<8x128xbf16>
    %c0_1 = arith.constant 0 : index
    %c0_2 = arith.constant 0 : index
    %1 = vector.load %arg2[%c0_1, %c0_2] : memref<128x512xbf16, #tpu.memory_space<vmem>>, vector<128x512xbf16>
    %cst = arith.constant dense<0.000000e+00> : vector<8x512xf32>
    %2 = tpu.matmul %0, %1, %cst {dimension_numbers = #tpu.dot_dimension_numbers<[1], [0], [0], [1], [0, 0, 1, 1], [], []>} : vector<8x128xbf16>, vector<128x512xbf16>, vector<8x512xf32> -> vector<8x512xf32>
    %c0_3 = arith.constant 0 : index
    %c0_4 = arith.constant 0 : index
    %3 = vector.load %arg3[%c0_3, %c0_4] : memref<8x512xf32, #tpu.memory_space<vmem>>, vector<8x512xf32>
    tpu.vector_store %arg3[%c0_3, %c0_4], %2 {strides = array<i32>} : memref<8x512xf32, #tpu.memory_space<vmem>>, vector<8x512xf32>,
    return
  }
  func.func @transform_0(%arg0: i32) -> (i32, i32) {
    %c0_i32 = arith.constant 0 : i32
    %c0_i32_0 = arith.constant 0 : i32
    %c0_i32_1 = arith.constant 0 : i32
    return %c0_i32, %c0_i32_0 : i32, i32
  }
  func.func @transform_1(%arg0: i32) -> (i32, i32) {
    %c0_i32 = arith.constant 0 : i32
    %c0_i32_0 = arith.constant 0 : i32
    return %c0_i32, %arg0 : i32, i32
  }
  func.func @transform_2(%arg0: i32) -> (i32, i32) {
    %c0_i32 = arith.constant 0 : i32
    %c0_i32_0 = arith.constant 0 : i32
    return %c0_i32, %arg0 : i32, i32
  }
}

module attributes {stable_mosaic.version = 11 : i64} {
  func.func @_coarse_kernel(%arg0: i32, %arg1: memref<8x512xbf16, #tpu.memory_space<vmem>>, %arg2: memref<512x128xbf16, #tpu.memory_space<vmem>>, %arg3: memref<128x128xbf16, #tpu.memory_space<vmem>>, %arg4: memref<8x16xbf16, #tpu.memory_space<vmem>>, %arg5: memref<8x1xf32, #tpu.memory_space<vmem>>, %arg6: memref<8x16xbf16, #tpu.memory_space<vmem>>, %arg7: memref<8x1xf32, #tpu.memory_space<vmem>>, %arg8: memref<8x128xbf16, #tpu.memory_space<vmem>>, %arg9: memref<8x128xf32, #tpu.memory_space<vmem>>) attributes {dimension_semantics = [#tpu.dimension_semantics<arbitrary>], iteration_bounds = array<i64: 2>, scalar_prefetch = 0 : i64, scratch_operands = 1 : i64, tpu.core_type = #tpu.core_type<tc>, window_params = [{transform_indices = @transform_0, window_bounds = array<i64: 8, 512>}, {transform_indices = @transform_1, window_bounds = array<i64: 512, 128>}, {pipeline_mode = #tpu.pipeline_mode<synchronous>, transform_indices = @transform_2, window_bounds = array<i64: 128, 128>}, {pipeline_mode = #tpu.pipeline_mode<synchronous>, transform_indices = @transform_3, window_bounds = array<i64: 8, 16>}, {pipeline_mode = #tpu.pipeline_mode<synchronous>, transform_indices = @transform_4, window_bounds = array<i64: 8, 1>}, {pipeline_mode = #tpu.pipeline_mode<synchronous>, transform_indices = @transform_5, window_bounds = array<i64: 8, 16>}, {pipeline_mode = #tpu.pipeline_mode<synchronous>, transform_indices = @transform_6, window_bounds = array<i64: 8, 1>}, {pipeline_mode = #tpu.pipeline_mode<synchronous>, transform_indices = @transform_7, window_bounds = array<i64: 8, 128>}]} {
    %c0_i32 = arith.constant 0 : i32
    %0 = arith.cmpi eq, %arg0, %c0_i32 : i32
    %1 = arith.extui %0 : i1 to i32
    %c0_i32_0 = arith.constant 0 : i32
    %2 = arith.cmpi ne, %1, %c0_i32_0 : i32
    scf.if %2 {
      %cst_9 = arith.constant 0.000000e+00 : f32
      %12 = vector.broadcast %cst_9 : f32 to vector<8x128xf32>
      %c0_10 = arith.constant 0 : index
      %c0_11 = arith.constant 0 : index
      %13 = vector.load %arg9[%c0_10, %c0_11] : memref<8x128xf32, #tpu.memory_space<vmem>>, vector<8x128xf32>
      tpu.vector_store %arg9[%c0_10, %c0_11], %12 {strides = array<i32>} : memref<8x128xf32, #tpu.memory_space<vmem>>, vector<8x128xf32>,
    } else {
    }
    %c0 = arith.constant 0 : index
    %c0_1 = arith.constant 0 : index
    %3 = vector.load %arg9[%c0, %c0_1] : memref<8x128xf32, #tpu.memory_space<vmem>>, vector<8x128xf32>
    %c0_2 = arith.constant 0 : index
    %c0_3 = arith.constant 0 : index
    %4 = vector.load %arg1[%c0_2, %c0_3] : memref<8x512xbf16, #tpu.memory_space<vmem>>, vector<8x512xbf16>
    %c0_4 = arith.constant 0 : index
    %c0_5 = arith.constant 0 : index
    %5 = vector.load %arg2[%c0_4, %c0_5] : memref<512x128xbf16, #tpu.memory_space<vmem>>, vector<512x128xbf16>
    %cst = arith.constant dense<0.000000e+00> : vector<8x128xf32>
    %6 = tpu.matmul %4, %5, %cst {dimension_numbers = #tpu.dot_dimension_numbers<[1], [0], [0], [1], [0, 0, 1, 1], [], []>} : vector<8x512xbf16>, vector<512x128xbf16>, vector<8x128xf32> -> vector<8x128xf32>
    %7 = arith.addf %3, %6 : vector<8x128xf32>
    %c0_6 = arith.constant 0 : index
    %c0_7 = arith.constant 0 : index
    %8 = vector.load %arg9[%c0_6, %c0_7] : memref<8x128xf32, #tpu.memory_space<vmem>>, vector<8x128xf32>
    tpu.vector_store %arg9[%c0_6, %c0_7], %7 {strides = array<i32>} : memref<8x128xf32, #tpu.memory_space<vmem>>, vector<8x128xf32>,
    %c1_i32 = arith.constant 1 : i32
    %9 = arith.cmpi eq, %arg0, %c1_i32 : i32
    %10 = arith.extui %9 : i1 to i32
    %c0_i32_8 = arith.constant 0 : i32
    %11 = arith.cmpi ne, %10, %c0_i32_8 : i32
    scf.if %11 {
      %c0_9 = arith.constant 0 : index
      %c0_10 = arith.constant 0 : index
      %12 = vector.load %arg3[%c0_9, %c0_10] : memref<128x128xbf16, #tpu.memory_space<vmem>>, vector<128x128xbf16>
      %c0_11 = arith.constant 0 : index
      %c0_12 = arith.constant 0 : index
      %13 = vector.load %arg9[%c0_11, %c0_12] : memref<8x128xf32, #tpu.memory_space<vmem>>, vector<8x128xf32>
      %14 = arith.truncf %13 : vector<8x128xf32> to vector<8x128xbf16>
      %cst_13 = arith.constant dense<0.000000e+00> : vector<8x128xf32>
      %15 = tpu.matmul %14, %12, %cst_13 {dimension_numbers = #tpu.dot_dimension_numbers<[1], [0], [0], [1], [0, 0, 1, 1], [], []>} : vector<8x128xbf16>, vector<128x128xbf16>, vector<8x128xf32> -> vector<8x128xf32>
      %16 = tpu.concatenate %13, %15 in 0 : vector<8x128xf32>, vector<8x128xf32> -> vector<16x128xf32>
      %17 = arith.truncf %16 : vector<16x128xf32> to vector<16x128xbf16>
      %c0_14 = arith.constant 0 : index
      %c0_15 = arith.constant 0 : index
      %18 = vector.load %arg4[%c0_14, %c0_15] : memref<8x16xbf16, #tpu.memory_space<vmem>>, vector<8x16xbf16>
      %cst_16 = arith.constant dense<0.000000e+00> : vector<8x128xf32>
      %19 = tpu.matmul %18, %17, %cst_16 {dimension_numbers = #tpu.dot_dimension_numbers<[1], [0], [0], [1], [0, 0, 1, 1], [], []>} : vector<8x16xbf16>, vector<16x128xbf16>, vector<8x128xf32> -> vector<8x128xf32>
      %c0_17 = arith.constant 0 : index
      %c0_18 = arith.constant 0 : index
      %20 = vector.load %arg5[%c0_17, %c0_18] : memref<8x1xf32, #tpu.memory_space<vmem>>, vector<8x1xf32>
      %21 = vector.broadcast %20 : vector<8x1xf32> to vector<8x128xf32>
      %22 = arith.addf %19, %21 : vector<8x128xf32>
      %23 = arith.truncf %22 : vector<8x128xf32> to vector<8x128xbf16>
      %cst_19 = arith.constant dense<0.000000e+00> : vector<8x128xf32>
      %24 = tpu.matmul %23, %12, %cst_19 {dimension_numbers = #tpu.dot_dimension_numbers<[1], [0], [0], [1], [0, 0, 1, 1], [], []>} : vector<8x128xbf16>, vector<128x128xbf16>, vector<8x128xf32> -> vector<8x128xf32>
      %25 = tpu.concatenate %22, %24 in 0 : vector<8x128xf32>, vector<8x128xf32> -> vector<16x128xf32>
      %26 = arith.truncf %25 : vector<16x128xf32> to vector<16x128xbf16>
      %c0_20 = arith.constant 0 : index
      %c0_21 = arith.constant 0 : index
      %27 = vector.load %arg6[%c0_20, %c0_21] : memref<8x16xbf16, #tpu.memory_space<vmem>>, vector<8x16xbf16>
      %cst_22 = arith.constant dense<0.000000e+00> : vector<8x128xf32>
      %28 = tpu.matmul %27, %26, %cst_22 {dimension_numbers = #tpu.dot_dimension_numbers<[1], [0], [0], [1], [0, 0, 1, 1], [], []>} : vector<8x16xbf16>, vector<16x128xbf16>, vector<8x128xf32> -> vector<8x128xf32>
      %c0_23 = arith.constant 0 : index
      %c0_24 = arith.constant 0 : index
      %29 = vector.load %arg7[%c0_23, %c0_24] : memref<8x1xf32, #tpu.memory_space<vmem>>, vector<8x1xf32>
      %30 = vector.broadcast %29 : vector<8x1xf32> to vector<8x128xf32>
      %31 = arith.addf %28, %30 : vector<8x128xf32>
      %32 = arith.truncf %31 : vector<8x128xf32> to vector<8x128xbf16>
      %c0_25 = arith.constant 0 : index
      %c0_26 = arith.constant 0 : index
      %33 = vector.load %arg8[%c0_25, %c0_26] : memref<8x128xbf16, #tpu.memory_space<vmem>>, vector<8x128xbf16>
      tpu.vector_store %arg8[%c0_25, %c0_26], %32 {strides = array<i32>} : memref<8x128xbf16, #tpu.memory_space<vmem>>, vector<8x128xbf16>,
    } else {
    }
    return
  }
  func.func @transform_0(%arg0: i32) -> (i32, i32) {
    %c0_i32 = arith.constant 0 : i32
    %c0_i32_0 = arith.constant 0 : i32
    return %c0_i32, %arg0 : i32, i32
  }
  func.func @transform_1(%arg0: i32) -> (i32, i32) {
    %c0_i32 = arith.constant 0 : i32
    %c0_i32_0 = arith.constant 0 : i32
    return %arg0, %c0_i32 : i32, i32
  }
  func.func @transform_2(%arg0: i32) -> (i32, i32) {
    %c0_i32 = arith.constant 0 : i32
    %c0_i32_0 = arith.constant 0 : i32
    %c0_i32_1 = arith.constant 0 : i32
    return %c0_i32, %c0_i32_0 : i32, i32
  }
  func.func @transform_3(%arg0: i32) -> (i32, i32) {
    %c0_i32 = arith.constant 0 : i32
    %c0_i32_0 = arith.constant 0 : i32
    %c0_i32_1 = arith.constant 0 : i32
    return %c0_i32, %c0_i32_0 : i32, i32
  }
  func.func @transform_4(%arg0: i32) -> (i32, i32) {
    %c0_i32 = arith.constant 0 : i32
    %c0_i32_0 = arith.constant 0 : i32
    %c0_i32_1 = arith.constant 0 : i32
    return %c0_i32, %c0_i32_0 : i32, i32
  }
  func.func @transform_5(%arg0: i32) -> (i32, i32) {
    %c0_i32 = arith.constant 0 : i32
    %c0_i32_0 = arith.constant 0 : i32
    %c0_i32_1 = arith.constant 0 : i32
    return %c0_i32, %c0_i32_0 : i32, i32
  }
  func.func @transform_6(%arg0: i32) -> (i32, i32) {
    %c0_i32 = arith.constant 0 : i32
    %c0_i32_0 = arith.constant 0 : i32
    %c0_i32_1 = arith.constant 0 : i32
    return %c0_i32, %c0_i32_0 : i32, i32
  }
  func.func @transform_7(%arg0: i32) -> (i32, i32) {
    %c0_i32 = arith.constant 0 : i32
    %c0_i32_0 = arith.constant 0 : i32
    %c0_i32_1 = arith.constant 0 : i32
    return %c0_i32, %c0_i32_0 : i32, i32
  }
}

</mosaic_0001>

<llo_original>
// kernel: convblock5_forward.3
$region0: #{convblock5_forward.3}
  #allocation0 [shape = 'u32[]', space=smem, size = 0x4, offset = 0x4, fixed_abs, tag = 'smem constant byte address 0x4 - core index']
  #allocation1 [shape = 'u32[144,128]{1,0:T(1,128)}', space=vmem, size = 0x12000, scoped, tag = 'internal scratch']
  %s0 = inlined_call_operand.vmem [shape: bf16[8,128], index: 0, kind: input, shape index: {}]
  %s1 = inlined_call_operand.vmem [shape: bf16[128,1024], index: 1, kind: input, shape index: {}]
  %s2 = inlined_call_operand.hbm [shape: f32[8,1024], index: 2, kind: output, shape index: {}]
  %s3 = sld [smem:[#allocation0]]
  $region64: #{convblock5_forward.3} parent=0
    _
  %s5 = ssub.s32 1, %s3
  %s6 = scalar_select 0, %s5, %s3
  $region1: #{convblock5_forward.3} parent=0
    #allocation2 [shape = 'u8[262144]{0}', space=vmem, size = 0x40000, scoped, tag = 'input window, operand 1']
    #allocation3 [shape = 'u8[32768]{0}', space=vmem, size = 0x8000, scoped, tag = 'output window, operand 0']
    #allocation4 [shape = 's32[2]{0}', space=sflag, size = 0x8, scoped, tag = 'scoped memory for convblock5_forward.3']
    %7 = vsyncpa [#allocation4], 0
    %s8 = scalar_lea.sflag [#allocation4], 1
    %9 = vsyncpa %s8, 0
    loop: start=0, step=1, limit=4
    $region2: #{convblock5_forward.3} parent=1 // loop_pre_header
      _
    $region3: #{convblock5_forward.3} parent=1 // loop_header
      %s11 = sphi 0, %s15
      %p12 = scmp.ge.s32.totalorder %s11, 4
      %s19 = sphi 0, %s19
      %s21 = sphi 0, %s19
      %s22 = sphi 0, %s21
      %s36 = sphi 0, %s22
      %s42 = sphi 0, %s44
      %s45 = sphi 0, %s42
      %s46 = sphi 0, %s45
      %s62 = sphi 0, %s46
      %s68 = sphi 0, %s70
      %s71 = sphi 0, %s68
      %s72 = sphi 0, %s71
      %s88 = sphi 0, %s72
    $region4: #{convblock5_forward.3} parent=1 // loop_header_branch
      %14 = sbr.rel (%p12) target = $region8
    $region5: #{convblock5_forward.3} parent=1 // loop_body
      %s16 = ssub.s32 %s11, 1
      %s17 = ssub.s32 %s11, 2
      %s18 = sadd.s32 %s11, 1
      %s20 = sadd.s32 %s19, 1
      %p23 = scmp.eq.s32.totalorder %s11, 1
      %p24 = scmp.ne.s32.totalorder %s19, %s21
      %p25 = scmp.eq.s32.totalorder %s11, 0
      %p26 = por %p24, %p25
      %p27 = scmp.ne.s32.totalorder %s19, %s21
      %p28 = scmp.eq.s32.totalorder %s16, 1
      %p29 = por %p27, %p28
      %p30 = scmp.ne.s32.totalorder %s21, %s22
      %p31 = scmp.eq.s32.totalorder %s16, 0
      %p32 = por %p30, %p31
      %p33 = scmp.ne.s32.totalorder %s21, %s22
      %p34 = scmp.eq.s32.totalorder %s17, 1
      %p35 = por %p33, %p34
      %p37 = scmp.ne.s32.totalorder %s22, %s36
      %p38 = scmp.eq.s32.totalorder %s17, 0
      %p39 = por %p37, %p38
      %s40 = ssub.s32 %s11, %s18
      %p41 = scmp.eq.s32.totalorder %s40, 0
      %s43 = sadd.s32 %s42, 1
      %s44 = scalar_select %p41, %s42, %s43
      %p47 = pneg %p41
      %p48 = scmp.eq.s32.totalorder %s11, 1
      %p49 = por %p47, %p48
      %p50 = scmp.ne.s32.totalorder %s42, %s45
      %p51 = scmp.eq.s32.totalorder %s11, 0
      %p52 = por %p50, %p51
      %p53 = scmp.ne.s32.totalorder %s42, %s45
      %p54 = scmp.eq.s32.totalorder %s16, 1
      %p55 = por %p53, %p54
      %p56 = scmp.ne.s32.totalorder %s45, %s46
      %p57 = scmp.eq.s32.totalorder %s16, 0
      %p58 = por %p56, %p57
      %p59 = scmp.ne.s32.totalorder %s45, %s46
      %p60 = scmp.eq.s32.totalorder %s17, 1
      %p61 = por %p59, %p60
      %p63 = scmp.ne.s32.totalorder %s46, %s62
      %p64 = scmp.eq.s32.totalorder %s17, 0
      %p65 = por %p63, %p64
      %s66 = ssub.s32 %s11, %s18
      %p67 = scmp.eq.s32.totalorder %s66, 0
      %s69 = sadd.s32 %s68, 1
      %s70 = scalar_select %p67, %s68, %s69
      %p73 = pneg %p67
      %p74 = scmp.eq.s32.totalorder %s11, 1
      %p75 = por %p73, %p74
      %p76 = scmp.ne.s32.totalorder %s68, %s71
      %p77 = scmp.eq.s32.totalorder %s11, 0
      %p78 = por %p76, %p77
      %p79 = scmp.ne.s32.totalorder %s68, %s71
      %p80 = scmp.eq.s32.totalorder %s16, 1
      %p81 = por %p79, %p80
      %p82 = scmp.ne.s32.totalorder %s71, %s72
      %p83 = scmp.eq.s32.totalorder %s16, 0
      %p84 = por %p82, %p83
      %p85 = scmp.ne.s32.totalorder %s71, %s72
      %p86 = scmp.eq.s32.totalorder %s17, 1
      %p87 = por %p85, %p86
      %p89 = scmp.ne.s32.totalorder %s72, %s88
      %p90 = scmp.eq.s32.totalorder %s17, 0
      %p91 = por %p89, %p90
      %p92 = scmp.le.s32.totalorder 1, %s11
      %p93 = scmp.lt.s32.totalorder %s11, 3
      %p94 = pnand %p92, %p93
      %p95 = pneg %p94
      // Predicated region
      $region9: #{convblock5_forward.3} parent=5 // pred_check
        _
      $region10: #{convblock5_forward.3} parent=5 // pred_check_branch
        %97 = sbr.rel (%p94) target = $region12
      $region11: #{convblock5_forward.3} parent=5 // pred_region
        %s98 = ssub.s32 %s11, 1
        // Predicated region
        $region13: #{convblock5_forward.3} parent=11 // pred_check
          %p99 = pneg %p32
        $region14: #{convblock5_forward.3} parent=11 // pred_check_branch
          %101 = sbr.rel (%p99) target = $region16
        $region15: #{convblock5_forward.3} parent=11 // pred_region
          _
        $region16: #{convblock5_forward.3} parent=11 // pred_fallthru
          _
      $region12: #{convblock5_forward.3} parent=5 // pred_fallthru
        _
      %p102 = scmp.lt.s32.totalorder %s11, 2
      // Predicated region
      $region17: #{convblock5_forward.3} parent=5 // pred_check
        %p103 = pneg %p102
      $region18: #{convblock5_forward.3} parent=5 // pred_check_branch
        %105 = sbr.rel (%p103) target = $region20
      $region19: #{convblock5_forward.3} parent=5 // pred_region
        // Predicated region
        $region21: #{convblock5_forward.3} parent=19 // pred_check
          %p106 = pneg %p52
        $region22: #{convblock5_forward.3} parent=19 // pred_check_branch
          %108 = sbr.rel (%p106) target = $region24
        $region23: #{convblock5_forward.3} parent=19 // pred_region
          %s109 = sand.u32 %s42, 1
          %s110 = sand.u32 %s42, 1
          %s111 = smul.addr %s110, 256
          %s112 = scalar_lea.vmem [#allocation2], %s111
          %s113 = smul.u32 4, %s11
          %s114 = smul.addr %s113, 4
          %s115 = scalar_lea.vmem %s1, %s114
          // Predicated region
          $region25: #{convblock5_forward.3} parent=23 // pred_check
            _
          $region26: #{convblock5_forward.3} parent=23 // pred_check_branch
            %117 = sbr.rel (0) target = $region28
          $region27: #{convblock5_forward.3} parent=23 // pred_region
            // Predicated region
            $region29: #{convblock5_forward.3} parent=27 // pred_check
              _
            $region30: #{convblock5_forward.3} parent=27 // pred_check_branch
              %119 = sbr.rel (0) target = $region32
            $region31: #{convblock5_forward.3} parent=27 // pred_region
              loop: start=0, step=1, limit=1
              $region33: #{convblock5_forward.3} parent=31 // loop_pre_header
                _
              $region34: #{convblock5_forward.3} parent=31 // loop_header
                %s121 = sphi 0, %s125
                %p122 = scmp.ge.s32.totalorder %s121, 1
                %s126 = sphi %s115, %s115
                %s127 = sphi %s112, %s112
              $region35: #{convblock5_forward.3} parent=31 // loop_header_branch
                %124 = sbr.rel (%p122) target = $region39
              $region36: #{convblock5_forward.3} parent=31 // loop_body
                %v128 = vld [vmem:[%s126] sm:$0xff]
                %129 = vst [vmem:[%s127] sm:$0xff] %v128
                %v130 = vld [vmem:[%s126 + $0x8] sm:$0xff]
                %131 = vst [vmem:[%s127 + $0x8] sm:$0xff] %v130
                %v132 = vld [vmem:[%s126 + $0x20] sm:$0xff]
                %133 = vst [vmem:[%s127 + $0x10] sm:$0xff] %v132
                %v134 = vld [vmem:[%s126 + $0x28] sm:$0xff]
                %135 = vst [vmem:[%s127 + $0x18] sm:$0xff] %v134
                %v136 = vld [vmem:[%s126 + $0x40] sm:$0xff]
                %137 = vst [vmem:[%s127 + $0x20] sm:$0xff] %v136
                %v138 = vld [vmem:[%s126 + $0x48] sm:$0xff]
                %139 = vst [vmem:[%s127 + $0x28] sm:$0xff] %v138
                %v140 = vld [vmem:[%s126 + $0x60] sm:$0xff]
                %141 = vst [vmem:[%s127 + $0x30] sm:$0xff] %v140
                %v142 = vld [vmem:[%s126 + $0x68] sm:$0xff]
                %143 = vst [vmem:[%s127 + $0x38] sm:$0xff] %v142
                %v144 = vld [vmem:[%s126 + $0x80] sm:$0xff]
                %145 = vst [vmem:[%s127 + $0x40] sm:$0xff] %v144
                %v146 = vld [vmem:[%s126 + $0x88] sm:$0xff]
                %147 = vst [vmem:[%s127 + $0x48] sm:$0xff] %v146
                %v148 = vld [vmem:[%s126 + $0xa0] sm:$0xff]
                %149 = vst [vmem:[%s127 + $0x50] sm:$0xff] %v148
                %v150 = vld [vmem:[%s126 + $0xa8] sm:$0xff]
                %151 = vst [vmem:[%s127 + $0x58] sm:$0xff] %v150
                %v152 = vld [vmem:[%s126 + $0xc0] sm:$0xff]
                %153 = vst [vmem:[%s127 + $0x60] sm:$0xff] %v152
                %v154 = vld [vmem:[%s126 + $0xc8] sm:$0xff]
                %155 = vst [vmem:[%s127 + $0x68] sm:$0xff] %v154
                %v156 = vld [vmem:[%s126 + $0xe0] sm:$0xff]
                %157 = vst [vmem:[%s127 + $0x70] sm:$0xff] %v156
                %v158 = vld [vmem:[%s126 + $0xe8] sm:$0xff]
                %159 = vst [vmem:[%s127 + $0x78] sm:$0xff] %v158
                %v160 = vld [vmem:[%s126 + $0x100] sm:$0xff]
                %161 = vst [vmem:[%s127 + $0x80] sm:$0xff] %v160
                %v162 = vld [vmem:[%s126 + $0x108] sm:$0xff]
                %163 = vst [vmem:[%s127 + $0x88] sm:$0xff] %v162
                %v164 = vld [vmem:[%s126 + $0x120] sm:$0xff]
                %165 = vst [vmem:[%s127 + $0x90] sm:$0xff] %v164
                %v166 = vld [vmem:[%s126 + $0x128] sm:$0xff]
                %167 = vst [vmem:[%s127 + $0x98] sm:$0xff] %v166
                %v168 = vld [vmem:[%s126 + $0x140] sm:$0xff]
                %169 = vst [vmem:[%s127 + $0xa0] sm:$0xff] %v168
                %v170 = vld [vmem:[%s126 + $0x148] sm:$0xff]
                %171 = vst [vmem:[%s127 + $0xa8] sm:$0xff] %v170
                %v172 = vld [vmem:[%s126 + $0x160] sm:$0xff]
                %173 = vst [vmem:[%s127 + $0xb0] sm:$0xff] %v172
                %v174 = vld [vmem:[%s126 + $0x168] sm:$0xff]
                %175 = vst [vmem:[%s127 + $0xb8] sm:$0xff] %v174
                %v176 = vld [vmem:[%s126 + $0x180] sm:$0xff]
                %177 = vst [vmem:[%s127 + $0xc0] sm:$0xff] %v176
                %v178 = vld [vmem:[%s126 + $0x188] sm:$0xff]
                %179 = vst [vmem:[%s127 + $0xc8] sm:$0xff] %v178
                %v180 = vld [vmem:[%s126 + $0x1a0] sm:$0xff]
                %181 = vst [vmem:[%s127 + $0xd0] sm:$0xff] %v180
                %v182 = vld [vmem:[%s126 + $0x1a8] sm:$0xff]
                %183 = vst [vmem:[%s127 + $0xd8] sm:$0xff] %v182
                %v184 = vld [vmem:[%s126 + $0x1c0] sm:$0xff]
                %185 = vst [vmem:[%s127 + $0xe0] sm:$0xff] %v184
                %v186 = vld [vmem:[%s126 + $0x1c8] sm:$0xff]
                %187 = vst [vmem:[%s127 + $0xe8] sm:$0xff] %v186
                %v188 = vld [vmem:[%s126 + $0x1e0] sm:$0xff]
                %189 = vst [vmem:[%s127 + $0xf0] sm:$0xff] %v188
                %v190 = vld [vmem:[%s126 + $0x1e8] sm:$0xff]
                %191 = vst [vmem:[%s127 + $0xf8] sm:$0xff] %v190
              $region37: #{convblock5_forward.3} parent=31 // loop_footer
                %s125 = sadd.s32 1, %s121
              $region38: #{convblock5_forward.3} parent=31 // loop_footer_branch
                %120 = sbr.rel target = $region34
              $region39: #{convblock5_forward.3} parent=31 // loop_exit
                _
            $region32: #{convblock5_forward.3} parent=27 // pred_fallthru
              _
            // Predicated region
            $region40: #{convblock5_forward.3} parent=27 // pred_check
              _
            $region41: #{convblock5_forward.3} parent=27 // pred_check_branch
              %193 = sbr.rel target = $region43
            $region42: #{convblock5_forward.3} parent=27 // pred_region
              _
            $region43: #{convblock5_forward.3} parent=27 // pred_fallthru
              _
          $region28: #{convblock5_forward.3} parent=23 // pred_fallthru
            _
          %194 = vnop
        $region24: #{convblock5_forward.3} parent=19 // pred_fallthru
          _
      $region20: #{convblock5_forward.3} parent=5 // pred_fallthru
        _
      %p195 = scmp.le.s32.totalorder 1, %s11
      %p196 = scmp.lt.s32.totalorder %s11, 3
      %p197 = pnand %p195, %p196
      %p198 = pneg %p197
      // Predicated region
      $region44: #{convblock5_forward.3} parent=5 // pred_check
        _
      $region45: #{convblock5_forward.3} parent=5 // pred_check_branch
        %200 = sbr.rel (%p197) target = $region47
      $region46: #{convblock5_forward.3} parent=5 // pred_region
        %s201 = ssub.s32 %s11, 1
        %s202 = sand.u32 %s45, 1
        %s203 = sand.u32 %s45, 1
        %s204 = smul.addr %s203, 256
        %s205 = scalar_lea.vmem [#allocation2], %s204
        // Predicated region
        $region48: #{convblock5_forward.3} parent=46 // pred_check
          %p206 = pneg %p58
        $region49: #{convblock5_forward.3} parent=46 // pred_check_branch
          %208 = sbr.rel (%p206) target = $region51
        $region50: #{convblock5_forward.3} parent=46 // pred_region
          _
        $region51: #{convblock5_forward.3} parent=46 // pred_fallthru
          _
        %p209 = pneg %p32
        %p210 = pneg %p29
        %s211 = sand.u32 %s45, 1
        %s212 = sand.u32 %s45, 1
        %s213 = smul.addr %s212, 256
        %s214 = scalar_lea.vmem [#allocation2], %s213
        %p215 = pneg %p58
        %p216 = pneg %p55
        %p217 = pneg %p84
        %p218 = pneg %p81
        %s219 = sand.u32 %s71, 1
        %s220 = scalar_lea.sflag [#allocation4], %s219
        %s221 = sand.u32 %s71, 1
        %s222 = smul.addr %s221, 32
        %s223 = scalar_lea.vmem [#allocation3], %s222
        %s224 = smul.u32 4, %s16
        %s225 = smul.u32 4, %s16
        %v227 = vld [vmem:[%s0] sm:$0xf]
        %v228 = vld [vmem:[%s205] sm:$0xff]
        %v229 = vld [vmem:[%s205 + $0x8] sm:$0xff]
        %v230 = vld [vmem:[%s205 + $0x10] sm:$0xff]
        %v231 = vld [vmem:[%s205 + $0x18] sm:$0xff]
        %v232 = vld [vmem:[%s205 + $0x20] sm:$0xff]
        %v233 = vld [vmem:[%s205 + $0x28] sm:$0xff]
        %v234 = vld [vmem:[%s205 + $0x30] sm:$0xff]
        %v235 = vld [vmem:[%s205 + $0x38] sm:$0xff]
        %v236 = vld [vmem:[%s205 + $0x40] sm:$0xff]
        %v237 = vld [vmem:[%s205 + $0x48] sm:$0xff]
        %v238 = vld [vmem:[%s205 + $0x50] sm:$0xff]
        %v239 = vld [vmem:[%s205 + $0x58] sm:$0xff]
        %v240 = vld [vmem:[%s205 + $0x60] sm:$0xff]
        %v241 = vld [vmem:[%s205 + $0x68] sm:$0xff]
        %v242 = vld [vmem:[%s205 + $0x70] sm:$0xff]
        %v243 = vld [vmem:[%s205 + $0x78] sm:$0xff]
        %v244 = vld [vmem:[%s205 + $0x80] sm:$0xff]
        %v245 = vld [vmem:[%s205 + $0x88] sm:$0xff]
        %v246 = vld [vmem:[%s205 + $0x90] sm:$0xff]
        %v247 = vld [vmem:[%s205 + $0x98] sm:$0xff]
        %v248 = vld [vmem:[%s205 + $0xa0] sm:$0xff]
        %v249 = vld [vmem:[%s205 + $0xa8] sm:$0xff]
        %v250 = vld [vmem:[%s205 + $0xb0] sm:$0xff]
        %v251 = vld [vmem:[%s205 + $0xb8] sm:$0xff]
        %v252 = vld [vmem:[%s205 + $0xc0] sm:$0xff]
        %v253 = vld [vmem:[%s205 + $0xc8] sm:$0xff]
        %v254 = vld [vmem:[%s205 + $0xd0] sm:$0xff]
        %v255 = vld [vmem:[%s205 + $0xd8] sm:$0xff]
        %v256 = vld [vmem:[%s205 + $0xe0] sm:$0xff]
        %v257 = vld [vmem:[%s205 + $0xe8] sm:$0xff]
        %v258 = vld [vmem:[%s205 + $0xf0] sm:$0xff]
        %v259 = vld [vmem:[%s205 + $0xf8] sm:$0xff]
        %v292 = vunpack.c.l.b16 %v228
        %v293 = vunpack.c.h.b16 %v228
        %v294 = vunpack.c.l.b16 %v229
        %v295 = vunpack.c.h.b16 %v229
        %v296 = vunpack.c.l.b16 %v230
        %v297 = vunpack.c.h.b16 %v230
        %v298 = vunpack.c.l.b16 %v231
        %v299 = vunpack.c.h.b16 %v231
        %v300 = vunpack.c.l.b16 %v232
        %v301 = vunpack.c.h.b16 %v232
        %v302 = vunpack.c.l.b16 %v233
        %v303 = vunpack.c.h.b16 %v233
        %v304 = vunpack.c.l.b16 %v234
        %v305 = vunpack.c.h.b16 %v234
        %v306 = vunpack.c.l.b16 %v235
        %v307 = vunpack.c.h.b16 %v235
        %v308 = vunpack.c.l.b16 %v236
        %v309 = vunpack.c.h.b16 %v236
        %v310 = vunpack.c.l.b16 %v237
        %v311 = vunpack.c.h.b16 %v237
        %v312 = vunpack.c.l.b16 %v238
        %v313 = vunpack.c.h.b16 %v238
        %v314 = vunpack.c.l.b16 %v239
        %v315 = vunpack.c.h.b16 %v239
        %v316 = vunpack.c.l.b16 %v240
        %v317 = vunpack.c.h.b16 %v240
        %v318 = vunpack.c.l.b16 %v241
        %v319 = vunpack.c.h.b16 %v241
        %v320 = vunpack.c.l.b16 %v242
        %v321 = vunpack.c.h.b16 %v242
        %v322 = vunpack.c.l.b16 %v243
        %v323 = vunpack.c.h.b16 %v243
        %v324 = vunpack.c.l.b16 %v244
        %v325 = vunpack.c.h.b16 %v244
        %v326 = vunpack.c.l.b16 %v245
        %v327 = vunpack.c.h.b16 %v245
        %v328 = vunpack.c.l.b16 %v246
        %v329 = vunpack.c.h.b16 %v246
        %v330 = vunpack.c.l.b16 %v247
        %v331 = vunpack.c.h.b16 %v247
        %v332 = vunpack.c.l.b16 %v248
        %v333 = vunpack.c.h.b16 %v248
        %v334 = vunpack.c.l.b16 %v249
        %v335 = vunpack.c.h.b16 %v249
        %v336 = vunpack.c.l.b16 %v250
        %v337 = vunpack.c.h.b16 %v250
        %v338 = vunpack.c.l.b16 %v251
        %v339 = vunpack.c.h.b16 %v251
        %v340 = vunpack.c.l.b16 %v252
        %v341 = vunpack.c.h.b16 %v252
        %v342 = vunpack.c.l.b16 %v253
        %v343 = vunpack.c.h.b16 %v253
        %v344 = vunpack.c.l.b16 %v254
        %v345 = vunpack.c.h.b16 %v254
        %v346 = vunpack.c.l.b16 %v255
        %v347 = vunpack.c.h.b16 %v255
        %v348 = vunpack.c.l.b16 %v256
        %v349 = vunpack.c.h.b16 %v256
        %v350 = vunpack.c.l.b16 %v257
        %v351 = vunpack.c.h.b16 %v257
        %v352 = vunpack.c.l.b16 %v258
        %v353 = vunpack.c.h.b16 %v258
        %v354 = vunpack.c.l.b16 %v259
        %v355 = vunpack.c.h.b16 %v259
        %v356 = vpack.c.b16 %v296, %v292
        %v357 = vpack.c.b16 %v297, %v293
        %v358 = vpack.c.b16 %v298, %v294
        %v359 = vpack.c.b16 %v299, %v295
        %v360 = vpack.c.b16 %v304, %v300
        %v361 = vpack.c.b16 %v305, %v301
        %v362 = vpack.c.b16 %v306, %v302
        %v363 = vpack.c.b16 %v307, %v303
        %v364 = vpack.c.b16 %v312, %v308
        %v365 = vpack.c.b16 %v313, %v309
        %v366 = vpack.c.b16 %v314, %v310
        %v367 = vpack.c.b16 %v315, %v311
        %v368 = vpack.c.b16 %v320, %v316
        %v369 = vpack.c.b16 %v321, %v317
        %v370 = vpack.c.b16 %v322, %v318
        %v371 = vpack.c.b16 %v323, %v319
        %v372 = vpack.c.b16 %v328, %v324
        %v373 = vpack.c.b16 %v329, %v325
        %v374 = vpack.c.b16 %v330, %v326
        %v375 = vpack.c.b16 %v331, %v327
        %v376 = vpack.c.b16 %v336, %v332
        %v377 = vpack.c.b16 %v337, %v333
        %v378 = vpack.c.b16 %v338, %v334
        %v379 = vpack.c.b16 %v339, %v335
        %v380 = vpack.c.b16 %v344, %v340
        %v381 = vpack.c.b16 %v345, %v341
        %v382 = vpack.c.b16 %v346, %v342
        %v383 = vpack.c.b16 %v347, %v343
        %v384 = vpack.c.b16 %v352, %v348
        %v385 = vpack.c.b16 %v353, %v349
        %v386 = vpack.c.b16 %v354, %v350
        %v387 = vpack.c.b16 %v355, %v351
        %420 = vmatprep.subr.bf16.mxu0 %v357
        %421 = vmatpush1.bf16.msra.mxu0 %v356
        %422 = vmatprep.subr.bf16.mxu0 %v361
        %423 = vmatpush1.bf16.msra.mxu0 %v360
        %424 = vmatprep.subr.bf16.mxu0 %v365
        %425 = vmatpush1.bf16.msra.mxu0 %v364
        %426 = vmatprep.subr.bf16.mxu0 %v369
        %427 = vmatpush1.bf16.msra.mxu0 %v368
        %428 = vmatprep.subr.bf16.mxu0 %v373
        %429 = vmatpush1.bf16.msra.mxu0 %v372
        %430 = vmatprep.subr.bf16.mxu0 %v377
        %431 = vmatpush1.bf16.msra.mxu0 %v376
        %432 = vmatprep.subr.bf16.mxu0 %v381
        %433 = vmatpush1.bf16.msra.mxu0 %v380
        %434 = vmatprep.subr.bf16.mxu0 %v385
        %435 = vmatpush1.bf16.msra.mxu0 %v384
        %436 = vmatprep.subr.bf16.mxu0 0
        %437 = vmatpush1.bf16.msra.mxu0 0
        %438 = vmatprep.subr.bf16.mxu0 0
        %439 = vmatpush1.bf16.msra.mxu0 0
        %440 = vmatprep.subr.bf16.mxu0 0
        %441 = vmatpush1.bf16.msra.mxu0 0
        %442 = vmatprep.subr.bf16.mxu0 0
        %443 = vmatpush1.bf16.msra.mxu0 0
        %444 = vmatprep.subr.bf16.mxu0 0
        %445 = vmatpush1.bf16.msra.mxu0 0
        %446 = vmatprep.subr.bf16.mxu0 0
        %447 = vmatpush1.bf16.msra.mxu0 0
        %448 = vmatprep.subr.bf16.mxu0 0
        %449 = vmatpush1.bf16.msra.mxu0 0
        %450 = vmatprep.subr.bf16.mxu0 0
        %451 = vmatpush1.bf16.msra.mxu0 0
        %452 = vmatprep.mubr.bf16.mxu0 0
        %453 = vmatmul.mubr.bf16.gmra.mrb[0].mxu0 %v227
        %v454 = vpop.f32.mrb[0].mxu0
        %v455 = vadd.f32 0.0, %v454
        %v456 = vpop.f32.mrb[0].mxu0
        %v457 = vadd.f32 0.0, %v456
        %v458 = vpop.f32.mrb[0].mxu0
        %v459 = vpop.f32.mrb[0].mxu0
        %460 = vdwg.mxu0
        %461 = vmatprep.subr.bf16.mxu0 %v359
        %462 = vmatpush1.bf16.msra.mxu0 %v358
        %463 = vmatprep.subr.bf16.mxu0 %v363
        %464 = vmatpush1.bf16.msra.mxu0 %v362
        %465 = vmatprep.subr.bf16.mxu0 %v367
        %466 = vmatpush1.bf16.msra.mxu0 %v366
        %467 = vmatprep.subr.bf16.mxu0 %v371
        %468 = vmatpush1.bf16.msra.mxu0 %v370
        %469 = vmatprep.subr.bf16.mxu0 %v375
        %470 = vmatpush1.bf16.msra.mxu0 %v374
        %471 = vmatprep.subr.bf16.mxu0 %v379
        %472 = vmatpush1.bf16.msra.mxu0 %v378
        %473 = vmatprep.subr.bf16.mxu0 %v383
        %474 = vmatpush1.bf16.msra.mxu0 %v382
        %475 = vmatprep.subr.bf16.mxu0 %v387
        %476 = vmatpush1.bf16.msra.mxu0 %v386
        %477 = vmatprep.subr.bf16.mxu0 0
        %478 = vmatpush1.bf16.msra.mxu0 0
        %479 = vmatprep.subr.bf16.mxu0 0
        %480 = vmatpush1.bf16.msra.mxu0 0
        %481 = vmatprep.subr.bf16.mxu0 0
        %482 = vmatpush1.bf16.msra.mxu0 0
        %483 = vmatprep.subr.bf16.mxu0 0
        %484 = vmatpush1.bf16.msra.mxu0 0
        %485 = vmatprep.subr.bf16.mxu0 0
        %486 = vmatpush1.bf16.msra.mxu0 0
        %487 = vmatprep.subr.bf16.mxu0 0
        %488 = vmatpush1.bf16.msra.mxu0 0
        %489 = vmatprep.subr.bf16.mxu0 0
        %490 = vmatpush1.bf16.msra.mxu0 0
        %491 = vmatprep.subr.bf16.mxu0 0
        %492 = vmatpush1.bf16.msra.mxu0 0
        %493 = vmatprep.mubr.bf16.mxu0 0
        %494 = vmatmul.mubr.bf16.gmra.mrb[0].mxu0 %v227
        %v495 = vpop.f32.mrb[0].mxu0
        %v496 = vadd.f32 0.0, %v495
        %v497 = vpop.f32.mrb[0].mxu0
        %v498 = vadd.f32 0.0, %v497
        %v499 = vpop.f32.mrb[0].mxu0
        %v500 = vpop.f32.mrb[0].mxu0
        %501 = vdwg.mxu0
        %502 = vst [vmem:[%s223] sm:$0xff] %v455
        %503 = vst [vmem:[%s223 + $0x8] sm:$0xff] %v457
        %504 = vst [vmem:[%s223 + $0x10] sm:$0xff] %v496
        %505 = vst [vmem:[%s223 + $0x18] sm:$0xff] %v498
        %s506 = sand.u32 %s71, 1
        %s507 = scalar_lea.sflag [#allocation4], %s506
        %s508 = sand.u32 %s71, 1
        %s509 = smul.addr %s508, 32
        %s510 = scalar_lea.vmem [#allocation3], %s509
        // Predicated region
        $region52: #{convblock5_forward.3} parent=46 // pred_check
          %p511 = pneg %p81
        $region53: #{convblock5_forward.3} parent=46 // pred_check_branch
          %513 = sbr.rel (%p511) target = $region55
        $region54: #{convblock5_forward.3} parent=46 // pred_region
          %s514 = smul.u32 4, %s16
          %s516 = ssub.s32 512, 512
          %517 = vsyncadd %s507, %s516
          %s518 = smul.addr %s514, 128
          %s519 = scalar_lea.hbm %s2, %s518
          %s521 = sshll.u32 %s510, 4
          %s522 = int_to_ptr.vmem [resolvable:$true] %s521
          %524 = dma.vmem_to_hbm [thread:$0]  %s522, 512, %s519, %s507
        $region55: #{convblock5_forward.3} parent=46 // pred_fallthru
          _
      $region47: #{convblock5_forward.3} parent=5 // pred_fallthru
        _
      %p525 = scmp.le.s32.totalorder 2, %s11
      // Predicated region
      $region56: #{convblock5_forward.3} parent=5 // pred_check
        %p526 = pneg %p525
      $region57: #{convblock5_forward.3} parent=5 // pred_check_branch
        %528 = sbr.rel (%p526) target = $region59
      $region58: #{convblock5_forward.3} parent=5 // pred_region
        %s529 = ssub.s32 %s11, 2
        // Predicated region
        $region60: #{convblock5_forward.3} parent=58 // pred_check
          %p530 = pneg %p87
        $region61: #{convblock5_forward.3} parent=58 // pred_check_branch
          %532 = sbr.rel (%p530) target = $region63
        $region62: #{convblock5_forward.3} parent=58 // pred_region
          %s533 = sand.u32 %s72, 1
          %s534 = scalar_lea.sflag [#allocation4], %s533
          %s535 = sand.u32 %s72, 1
          %s536 = smul.addr %s535, 32
          %s537 = scalar_lea.vmem [#allocation3], %s536
          %538 = dma.done %s534, 512
        $region63: #{convblock5_forward.3} parent=58 // pred_fallthru
          _
      $region59: #{convblock5_forward.3} parent=5 // pred_fallthru
        _
    $region6: #{convblock5_forward.3} parent=1 // loop_footer
      %s15 = sadd.s32 1, %s11
    $region7: #{convblock5_forward.3} parent=1 // loop_footer_branch
      %10 = sbr.rel target = $region3
    $region8: #{convblock5_forward.3} parent=1 // loop_exit
      _
    %539 = vsyncpa [#allocation4], 1
    %s540 = scalar_lea.sflag [#allocation4], 1
    %541 = vsyncpa %s540, 1

// kernel: convblock5_forward.2
$region0: #{convblock5_forward.2}
  #allocation0 [shape = 'u32[]', space=smem, size = 0x4, offset = 0x4, fixed_abs, tag = 'smem constant byte address 0x4 - core index']
  #allocation1 [shape = 'u32[144,128]{1,0:T(1,128)}', space=vmem, size = 0x12000, scoped, tag = 'internal scratch']
  #allocation2 [shape = 'f32[8,128]{1,0:T(8,128)}', space=vmem, size = 0x1000, scoped, tag = 'scratch operand']
  %s0 = inlined_call_operand.vmem [shape: bf16[8,1024], index: 0, kind: input, shape index: {}]
  %s1 = inlined_call_operand.vmem [shape: bf16[1024,128], index: 1, kind: input, shape index: {}]
  %s2 = inlined_call_operand.vmem [shape: bf16[128,128], index: 2, kind: input, shape index: {}]
  %s3 = inlined_call_operand.vmem [shape: bf16[8,16], index: 3, kind: input, shape index: {}]
  %s4 = inlined_call_operand.vmem [shape: f32[8,1], index: 4, kind: input, shape index: {}]
  %s5 = inlined_call_operand.vmem [shape: bf16[8,16], index: 5, kind: input, shape index: {}]
  %s6 = inlined_call_operand.vmem [shape: f32[8,1], index: 6, kind: input, shape index: {}]
  %s7 = inlined_call_operand.vmem [shape: bf16[8,128], index: 7, kind: output, shape index: {}]
  %s8 = sld [smem:[#allocation0]]
  $region69: #{convblock5_forward.2} parent=0
    _
  %s10 = ssub.s32 1, %s8
  %s11 = scalar_select 0, %s10, %s8
  loop: start=0, step=1, limit=4
  $region2: #{convblock5_forward.2} parent=0 // loop_pre_header
    _
  $region3: #{convblock5_forward.2} parent=0 // loop_header
    %s13 = sphi 0, %s17
    %p14 = scmp.ge.s32.totalorder %s13, 4
    %s23 = sphi 0, %s25
    %s26 = sphi 0, %s23
    %s27 = sphi 0, %s26
    %s43 = sphi 0, %s27
    %s49 = sphi 0, %s51
    %s52 = sphi 0, %s49
    %s53 = sphi 0, %s52
    %s69 = sphi 0, %s53
    %s73 = sphi 0, %s73
    %s75 = sphi 0, %s73
    %s76 = sphi 0, %s75
    %s90 = sphi 0, %s76
    %s94 = sphi 0, %s94
    %s96 = sphi 0, %s94
    %s97 = sphi 0, %s96
    %s111 = sphi 0, %s97
    %s115 = sphi 0, %s115
    %s117 = sphi 0, %s115
    %s118 = sphi 0, %s117
    %s132 = sphi 0, %s118
    %s136 = sphi 0, %s136
    %s138 = sphi 0, %s136
    %s139 = sphi 0, %s138
    %s153 = sphi 0, %s139
    %s157 = sphi 0, %s157
    %s159 = sphi 0, %s157
    %s160 = sphi 0, %s159
    %s174 = sphi 0, %s160
    %s178 = sphi 0, %s178
    %s180 = sphi 0, %s178
    %s181 = sphi 0, %s180
    %s195 = sphi 0, %s181
  $region4: #{convblock5_forward.2} parent=0 // loop_header_branch
    %16 = sbr.rel (%p14) target = $region8
  $region5: #{convblock5_forward.2} parent=0 // loop_body
    %s18 = ssub.s32 %s13, 1
    %s19 = ssub.s32 %s13, 2
    %s20 = sadd.s32 %s13, 1
    %s21 = ssub.s32 %s13, %s20
    %p22 = scmp.eq.s32.totalorder %s21, 0
    %s24 = sadd.s32 %s23, 1
    %s25 = scalar_select %p22, %s23, %s24
    %p28 = pneg %p22
    %p29 = scmp.eq.s32.totalorder %s13, 1
    %p30 = por %p28, %p29
    %p31 = scmp.ne.s32.totalorder %s23, %s26
    %p32 = scmp.eq.s32.totalorder %s13, 0
    %p33 = por %p31, %p32
    %p34 = scmp.ne.s32.totalorder %s23, %s26
    %p35 = scmp.eq.s32.totalorder %s18, 1
    %p36 = por %p34, %p35
    %p37 = scmp.ne.s32.totalorder %s26, %s27
    %p38 = scmp.eq.s32.totalorder %s18, 0
    %p39 = por %p37, %p38
    %p40 = scmp.ne.s32.totalorder %s26, %s27
    %p41 = scmp.eq.s32.totalorder %s19, 1
    %p42 = por %p40, %p41
    %p44 = scmp.ne.s32.totalorder %s27, %s43
    %p45 = scmp.eq.s32.totalorder %s19, 0
    %p46 = por %p44, %p45
    %s47 = ssub.s32 %s13, %s20
    %p48 = scmp.eq.s32.totalorder %s47, 0
    %s50 = sadd.s32 %s49, 1
    %s51 = scalar_select %p48, %s49, %s50
    %p54 = pneg %p48
    %p55 = scmp.eq.s32.totalorder %s13, 1
    %p56 = por %p54, %p55
    %p57 = scmp.ne.s32.totalorder %s49, %s52
    %p58 = scmp.eq.s32.totalorder %s13, 0
    %p59 = por %p57, %p58
    %p60 = scmp.ne.s32.totalorder %s49, %s52
    %p61 = scmp.eq.s32.totalorder %s18, 1
    %p62 = por %p60, %p61
    %p63 = scmp.ne.s32.totalorder %s52, %s53
    %p64 = scmp.eq.s32.totalorder %s18, 0
    %p65 = por %p63, %p64
    %p66 = scmp.ne.s32.totalorder %s52, %s53
    %p67 = scmp.eq.s32.totalorder %s19, 1
    %p68 = por %p66, %p67
    %p70 = scmp.ne.s32.totalorder %s53, %s69
    %p71 = scmp.eq.s32.totalorder %s19, 0
    %p72 = por %p70, %p71
    %s74 = sadd.s32 %s73, 1
    %p77 = scmp.eq.s32.totalorder %s13, 1
    %p78 = scmp.ne.s32.totalorder %s73, %s75
    %p79 = scmp.eq.s32.totalorder %s13, 0
    %p80 = por %p78, %p79
    %p81 = scmp.ne.s32.totalorder %s73, %s75
    %p82 = scmp.eq.s32.totalorder %s18, 1
    %p83 = por %p81, %p82
    %p84 = scmp.ne.s32.totalorder %s75, %s76
    %p85 = scmp.eq.s32.totalorder %s18, 0
    %p86 = por %p84, %p85
    %p87 = scmp.ne.s32.totalorder %s75, %s76
    %p88 = scmp.eq.s32.totalorder %s19, 1
    %p89 = por %p87, %p88
    %p91 = scmp.ne.s32.totalorder %s76, %s90
    %p92 = scmp.eq.s32.totalorder %s19, 0
    %p93 = por %p91, %p92
    %s95 = sadd.s32 %s94, 1
    %p98 = scmp.eq.s32.totalorder %s13, 1
    %p99 = scmp.ne.s32.totalorder %s94, %s96
    %p100 = scmp.eq.s32.totalorder %s13, 0
    %p101 = por %p99, %p100
    %p102 = scmp.ne.s32.totalorder %s94, %s96
    %p103 = scmp.eq.s32.totalorder %s18, 1
    %p104 = por %p102, %p103
    %p105 = scmp.ne.s32.totalorder %s96, %s97
    %p106 = scmp.eq.s32.totalorder %s18, 0
    %p107 = por %p105, %p106
    %p108 = scmp.ne.s32.totalorder %s96, %s97
    %p109 = scmp.eq.s32.totalorder %s19, 1
    %p110 = por %p108, %p109
    %p112 = scmp.ne.s32.totalorder %s97, %s111
    %p113 = scmp.eq.s32.totalorder %s19, 0
    %p114 = por %p112, %p113
    %s116 = sadd.s32 %s115, 1
    %p119 = scmp.eq.s32.totalorder %s13, 1
    %p120 = scmp.ne.s32.totalorder %s115, %s117
    %p121 = scmp.eq.s32.totalorder %s13, 0
    %p122 = por %p120, %p121
    %p123 = scmp.ne.s32.totalorder %s115, %s117
    %p124 = scmp.eq.s32.totalorder %s18, 1
    %p125 = por %p123, %p124
    %p126 = scmp.ne.s32.totalorder %s117, %s118
    %p127 = scmp.eq.s32.totalorder %s18, 0
    %p128 = por %p126, %p127
    %p129 = scmp.ne.s32.totalorder %s117, %s118
    %p130 = scmp.eq.s32.totalorder %s19, 1
    %p131 = por %p129, %p130
    %p133 = scmp.ne.s32.totalorder %s118, %s132
    %p134 = scmp.eq.s32.totalorder %s19, 0
    %p135 = por %p133, %p134
    %s137 = sadd.s32 %s136, 1
    %p140 = scmp.eq.s32.totalorder %s13, 1
    %p141 = scmp.ne.s32.totalorder %s136, %s138
    %p142 = scmp.eq.s32.totalorder %s13, 0
    %p143 = por %p141, %p142
    %p144 = scmp.ne.s32.totalorder %s136, %s138
    %p145 = scmp.eq.s32.totalorder %s18, 1
    %p146 = por %p144, %p145
    %p147 = scmp.ne.s32.totalorder %s138, %s139
    %p148 = scmp.eq.s32.totalorder %s18, 0
    %p149 = por %p147, %p148
    %p150 = scmp.ne.s32.totalorder %s138, %s139
    %p151 = scmp.eq.s32.totalorder %s19, 1
    %p152 = por %p150, %p151
    %p154 = scmp.ne.s32.totalorder %s139, %s153
    %p155 = scmp.eq.s32.totalorder %s19, 0
    %p156 = por %p154, %p155
    %s158 = sadd.s32 %s157, 1
    %p161 = scmp.eq.s32.totalorder %s13, 1
    %p162 = scmp.ne.s32.totalorder %s157, %s159
    %p163 = scmp.eq.s32.totalorder %s13, 0
    %p164 = por %p162, %p163
    %p165 = scmp.ne.s32.totalorder %s157, %s159
    %p166 = scmp.eq.s32.totalorder %s18, 1
    %p167 = por %p165, %p166
    %p168 = scmp.ne.s32.totalorder %s159, %s160
    %p169 = scmp.eq.s32.totalorder %s18, 0
    %p170 = por %p168, %p169
    %p171 = scmp.ne.s32.totalorder %s159, %s160
    %p172 = scmp.eq.s32.totalorder %s19, 1
    %p173 = por %p171, %p172
    %p175 = scmp.ne.s32.totalorder %s160, %s174
    %p176 = scmp.eq.s32.totalorder %s19, 0
    %p177 = por %p175, %p176
    %s179 = sadd.s32 %s178, 1
    %p182 = scmp.eq.s32.totalorder %s13, 1
    %p183 = scmp.ne.s32.totalorder %s178, %s180
    %p184 = scmp.eq.s32.totalorder %s13, 0
    %p185 = por %p183, %p184
    %p186 = scmp.ne.s32.totalorder %s178, %s180
    %p187 = scmp.eq.s32.totalorder %s18, 1
    %p188 = por %p186, %p187
    %p189 = scmp.ne.s32.totalorder %s180, %s181
    %p190 = scmp.eq.s32.totalorder %s18, 0
    %p191 = por %p189, %p190
    %p192 = scmp.ne.s32.totalorder %s180, %s181
    %p193 = scmp.eq.s32.totalorder %s19, 1
    %p194 = por %p192, %p193
    %p196 = scmp.ne.s32.totalorder %s181, %s195
    %p197 = scmp.eq.s32.totalorder %s19, 0
    %p198 = por %p196, %p197
    %p199 = scmp.le.s32.totalorder 1, %s13
    %p200 = scmp.lt.s32.totalorder %s13, 3
    %p201 = pnand %p199, %p200
    %p202 = pneg %p201
    // Predicated region
    $region9: #{convblock5_forward.2} parent=5 // pred_check
      _
    $region10: #{convblock5_forward.2} parent=5 // pred_check_branch
      %204 = sbr.rel (%p201) target = $region12
    $region11: #{convblock5_forward.2} parent=5 // pred_region
      %s205 = ssub.s32 %s13, 1
      // Predicated region
      $region13: #{convblock5_forward.2} parent=11 // pred_check
        %p206 = pneg %p86
      $region14: #{convblock5_forward.2} parent=11 // pred_check_branch
        %208 = sbr.rel (%p206) target = $region16
      $region15: #{convblock5_forward.2} parent=11 // pred_region
        _
      $region16: #{convblock5_forward.2} parent=11 // pred_fallthru
        _
      // Predicated region
      $region17: #{convblock5_forward.2} parent=11 // pred_check
        %p209 = pneg %p107
      $region18: #{convblock5_forward.2} parent=11 // pred_check_branch
        %211 = sbr.rel (%p209) target = $region20
      $region19: #{convblock5_forward.2} parent=11 // pred_region
        _
      $region20: #{convblock5_forward.2} parent=11 // pred_fallthru
        _
      // Predicated region
      $region21: #{convblock5_forward.2} parent=11 // pred_check
        %p212 = pneg %p128
      $region22: #{convblock5_forward.2} parent=11 // pred_check_branch
        %214 = sbr.rel (%p212) target = $region24
      $region23: #{convblock5_forward.2} parent=11 // pred_region
        _
      $region24: #{convblock5_forward.2} parent=11 // pred_fallthru
        _
      // Predicated region
      $region25: #{convblock5_forward.2} parent=11 // pred_check
        %p215 = pneg %p149
      $region26: #{convblock5_forward.2} parent=11 // pred_check_branch
        %217 = sbr.rel (%p215) target = $region28
      $region27: #{convblock5_forward.2} parent=11 // pred_region
        _
      $region28: #{convblock5_forward.2} parent=11 // pred_fallthru
        _
      // Predicated region
      $region29: #{convblock5_forward.2} parent=11 // pred_check
        %p218 = pneg %p170
      $region30: #{convblock5_forward.2} parent=11 // pred_check_branch
        %220 = sbr.rel (%p218) target = $region32
      $region31: #{convblock5_forward.2} parent=11 // pred_region
        _
      $region32: #{convblock5_forward.2} parent=11 // pred_fallthru
        _
    $region12: #{convblock5_forward.2} parent=5 // pred_fallthru
      _
    %p221 = scmp.lt.s32.totalorder %s13, 2
    // Predicated region
    $region33: #{convblock5_forward.2} parent=5 // pred_check
      %p222 = pneg %p221
    $region34: #{convblock5_forward.2} parent=5 // pred_check_branch
      %224 = sbr.rel (%p222) target = $region36
    $region35: #{convblock5_forward.2} parent=5 // pred_region
      // Predicated region
      $region37: #{convblock5_forward.2} parent=35 // pred_check
        %p225 = pneg %p33
      $region38: #{convblock5_forward.2} parent=35 // pred_check_branch
        %227 = sbr.rel (%p225) target = $region40
      $region39: #{convblock5_forward.2} parent=35 // pred_region
        %s228 = smul.u32 4, %s13
        %p229 = scmp.lt.s32.totalorder %s228, 7
        %s230 = scalar_select %p229, %s228, 7
        %s231 = smul.addr %s230, 4
        %s232 = scalar_lea.vmem %s0, %s231
        %s233 = smul.u32 4, %s13
      $region40: #{convblock5_forward.2} parent=35 // pred_fallthru
        _
      // Predicated region
      $region41: #{convblock5_forward.2} parent=35 // pred_check
        %p234 = pneg %p59
      $region42: #{convblock5_forward.2} parent=35 // pred_check_branch
        %236 = sbr.rel (%p234) target = $region44
      $region43: #{convblock5_forward.2} parent=35 // pred_region
        %s237 = smul.u32 64, %s13
        %p238 = scmp.lt.s32.totalorder %s237, 127
        %s239 = scalar_select %p238, %s237, 127
        %s240 = smul.addr %s239, 4
        %s241 = scalar_lea.vmem %s1, %s240
        %s242 = smul.u32 64, %s13
      $region44: #{convblock5_forward.2} parent=35 // pred_fallthru
        _
    $region36: #{convblock5_forward.2} parent=5 // pred_fallthru
      _
    %p243 = scmp.le.s32.totalorder 1, %s13
    %p244 = scmp.lt.s32.totalorder %s13, 3
    %p245 = pnand %p243, %p244
    %p246 = pneg %p245
    // Predicated region
    $region45: #{convblock5_forward.2} parent=5 // pred_check
      _
    $region46: #{convblock5_forward.2} parent=5 // pred_check_branch
      %248 = sbr.rel (%p245) target = $region48
    $region47: #{convblock5_forward.2} parent=5 // pred_region
      %s249 = ssub.s32 %s13, 1
      %s250 = smul.u32 4, %s18
      %p251 = scmp.lt.s32.totalorder %s250, 7
      %s252 = scalar_select %p251, %s250, 7
      %s253 = smul.addr %s252, 4
      %s254 = scalar_lea.vmem %s0, %s253
      %p255 = pneg %p39
      %p256 = pneg %p36
      %s257 = smul.u32 64, %s18
      %p258 = scmp.lt.s32.totalorder %s257, 127
      %s259 = scalar_select %p258, %s257, 127
      %s260 = smul.addr %s259, 4
      %s261 = scalar_lea.vmem %s1, %s260
      %p262 = pneg %p65
      %p263 = pneg %p62
      %p264 = pneg %p86
      %p265 = pneg %p83
      %p266 = pneg %p107
      %p267 = pneg %p104
      %p268 = pneg %p128
      %p269 = pneg %p125
      %p270 = pneg %p149
      %p271 = pneg %p146
      %p272 = pneg %p170
      %p273 = pneg %p167
      %p274 = pneg %p191
      %p275 = pneg %p188
      %s276 = smul.u32 4, %s18
      %p277 = scmp.lt.s32.totalorder %s276, 7
      %s278 = scalar_select %p277, %s276, 7
      %s279 = smul.addr %s278, 4
      %s280 = scalar_lea.vmem %s0, %s279
      %s281 = smul.u32 4, %s18
      %s282 = smul.u32 64, %s18
      %p283 = scmp.lt.s32.totalorder %s282, 127
      %s284 = scalar_select %p283, %s282, 127
      %s285 = smul.addr %s284, 4
      %s286 = scalar_lea.vmem %s1, %s285
      %s287 = smul.u32 64, %s18
      %p289 = scmp.eq.s32.totalorder %s18, 0
      // Predicated region
      $region49: #{convblock5_forward.2} parent=47 // pred_check
        %p290 = pneg %p289
      $region50: #{convblock5_forward.2} parent=47 // pred_check_branch
        %292 = sbr.rel (%p290) target = $region52
      $region51: #{convblock5_forward.2} parent=47 // pred_region
        %293 = vst [vmem:[#allocation2] sm:$0xff] 0.0
      $region52: #{convblock5_forward.2} parent=47 // pred_fallthru
        _
      %v294 = vld [vmem:[#allocation2] sm:$0xff]
      %v295 = vld [vmem:[%s280] sm:$0xff]
      %v296 = vld [vmem:[%s280 + $0x8] sm:$0xff]
      %v297 = vld [vmem:[%s286] sm:$0xf]
      %v298 = vld [vmem:[%s286 + $0x4] sm:$0xf]
      %v299 = vld [vmem:[%s286 + $0x8] sm:$0xf]
      %v300 = vld [vmem:[%s286 + $0xc] sm:$0xf]
      %v301 = vld [vmem:[%s286 + $0x10] sm:$0xf]
      %v302 = vld [vmem:[%s286 + $0x14] sm:$0xf]
      %v303 = vld [vmem:[%s286 + $0x18] sm:$0xf]
      %v304 = vld [vmem:[%s286 + $0x1c] sm:$0xf]
      %v305 = vld [vmem:[%s286 + $0x20] sm:$0xf]
      %v306 = vld [vmem:[%s286 + $0x24] sm:$0xf]
      %v307 = vld [vmem:[%s286 + $0x28] sm:$0xf]
      %v308 = vld [vmem:[%s286 + $0x2c] sm:$0xf]
      %v309 = vld [vmem:[%s286 + $0x30] sm:$0xf]
      %v310 = vld [vmem:[%s286 + $0x34] sm:$0xf]
      %v311 = vld [vmem:[%s286 + $0x38] sm:$0xf]
      %v312 = vld [vmem:[%s286 + $0x3c] sm:$0xf]
      %v313 = vld [vmem:[%s286 + $0x40] sm:$0xf]
      %v314 = vld [vmem:[%s286 + $0x44] sm:$0xf]
      %v315 = vld [vmem:[%s286 + $0x48] sm:$0xf]
      %v316 = vld [vmem:[%s286 + $0x4c] sm:$0xf]
      %v317 = vld [vmem:[%s286 + $0x50] sm:$0xf]
      %v318 = vld [vmem:[%s286 + $0x54] sm:$0xf]
      %v319 = vld [vmem:[%s286 + $0x58] sm:$0xf]
      %v320 = vld [vmem:[%s286 + $0x5c] sm:$0xf]
      %v321 = vld [vmem:[%s286 + $0x60] sm:$0xf]
      %v322 = vld [vmem:[%s286 + $0x64] sm:$0xf]
      %v323 = vld [vmem:[%s286 + $0x68] sm:$0xf]
      %v324 = vld [vmem:[%s286 + $0x6c] sm:$0xf]
      %v325 = vld [vmem:[%s286 + $0x70] sm:$0xf]
      %v326 = vld [vmem:[%s286 + $0x74] sm:$0xf]
      %v327 = vld [vmem:[%s286 + $0x78] sm:$0xf]
      %v328 = vld [vmem:[%s286 + $0x7c] sm:$0xf]
      %v329 = vld [vmem:[%s286 + $0x80] sm:$0xf]
      %v330 = vld [vmem:[%s286 + $0x84] sm:$0xf]
      %v331 = vld [vmem:[%s286 + $0x88] sm:$0xf]
      %v332 = vld [vmem:[%s286 + $0x8c] sm:$0xf]
      %v333 = vld [vmem:[%s286 + $0x90] sm:$0xf]
      %v334 = vld [vmem:[%s286 + $0x94] sm:$0xf]
      %v335 = vld [vmem:[%s286 + $0x98] sm:$0xf]
      %v336 = vld [vmem:[%s286 + $0x9c] sm:$0xf]
      %v337 = vld [vmem:[%s286 + $0xa0] sm:$0xf]
      %v338 = vld [vmem:[%s286 + $0xa4] sm:$0xf]
      %v339 = vld [vmem:[%s286 + $0xa8] sm:$0xf]
      %v340 = vld [vmem:[%s286 + $0xac] sm:$0xf]
      %v341 = vld [vmem:[%s286 + $0xb0] sm:$0xf]
      %v342 = vld [vmem:[%s286 + $0xb4] sm:$0xf]
      %v343 = vld [vmem:[%s286 + $0xb8] sm:$0xf]
      %v344 = vld [vmem:[%s286 + $0xbc] sm:$0xf]
      %v345 = vld [vmem:[%s286 + $0xc0] sm:$0xf]
      %v346 = vld [vmem:[%s286 + $0xc4] sm:$0xf]
      %v347 = vld [vmem:[%s286 + $0xc8] sm:$0xf]
      %v348 = vld [vmem:[%s286 + $0xcc] sm:$0xf]
      %v349 = vld [vmem:[%s286 + $0xd0] sm:$0xf]
      %v350 = vld [vmem:[%s286 + $0xd4] sm:$0xf]
      %v351 = vld [vmem:[%s286 + $0xd8] sm:$0xf]
      %v352 = vld [vmem:[%s286 + $0xdc] sm:$0xf]
      %v353 = vld [vmem:[%s286 + $0xe0] sm:$0xf]
      %v354 = vld [vmem:[%s286 + $0xe4] sm:$0xf]
      %v355 = vld [vmem:[%s286 + $0xe8] sm:$0xf]
      %v356 = vld [vmem:[%s286 + $0xec] sm:$0xf]
      %v357 = vld [vmem:[%s286 + $0xf0] sm:$0xf]
      %v358 = vld [vmem:[%s286 + $0xf4] sm:$0xf]
      %v359 = vld [vmem:[%s286 + $0xf8] sm:$0xf]
      %v360 = vld [vmem:[%s286 + $0xfc] sm:$0xf]
      %v363 = vunpack.c.l.b16 %v295
      %v364 = vunpack.c.h.b16 %v295
      %v365 = vunpack.c.l.b16 %v296
      %v366 = vunpack.c.h.b16 %v296
      %v367 = vpack.c.b16 %v363, %v363
      %v368 = vpack.c.b16 %v364, %v364
      %v369 = vpack.c.b16 %v365, %v365
      %v370 = vpack.c.b16 %v366, %v366
      %v439 = vunpack.c.l.b16 %v297
      %v440 = vunpack.c.l.b16 %v298
      %v441 = vunpack.c.l.b16 %v299
      %v442 = vunpack.c.l.b16 %v300
      %v443 = vunpack.c.l.b16 %v301
      %v444 = vunpack.c.l.b16 %v302
      %v445 = vunpack.c.l.b16 %v303
      %v446 = vunpack.c.l.b16 %v304
      %v447 = vunpack.c.l.b16 %v305
      %v448 = vunpack.c.l.b16 %v306
      %v449 = vunpack.c.l.b16 %v307
      %v450 = vunpack.c.l.b16 %v308
      %v451 = vunpack.c.l.b16 %v309
      %v452 = vunpack.c.l.b16 %v310
      %v453 = vunpack.c.l.b16 %v311
      %v454 = vunpack.c.l.b16 %v312
      %v455 = vunpack.c.l.b16 %v313
      %v456 = vunpack.c.l.b16 %v314
      %v457 = vunpack.c.l.b16 %v315
      %v458 = vunpack.c.l.b16 %v316
      %v459 = vunpack.c.l.b16 %v317
      %v460 = vunpack.c.l.b16 %v318
      %v461 = vunpack.c.l.b16 %v319
      %v462 = vunpack.c.l.b16 %v320
      %v463 = vunpack.c.l.b16 %v321
      %v464 = vunpack.c.l.b16 %v322
      %v465 = vunpack.c.l.b16 %v323
      %v466 = vunpack.c.l.b16 %v324
      %v467 = vunpack.c.l.b16 %v325
      %v468 = vunpack.c.l.b16 %v326
      %v469 = vunpack.c.l.b16 %v327
      %v470 = vunpack.c.l.b16 %v328
      %v471 = vunpack.c.l.b16 %v329
      %v472 = vunpack.c.l.b16 %v330
      %v473 = vunpack.c.l.b16 %v331
      %v474 = vunpack.c.l.b16 %v332
      %v475 = vunpack.c.l.b16 %v333
      %v476 = vunpack.c.l.b16 %v334
      %v477 = vunpack.c.l.b16 %v335
      %v478 = vunpack.c.l.b16 %v336
      %v479 = vunpack.c.l.b16 %v337
      %v480 = vunpack.c.l.b16 %v338
      %v481 = vunpack.c.l.b16 %v339
      %v482 = vunpack.c.l.b16 %v340
      %v483 = vunpack.c.l.b16 %v341
      %v484 = vunpack.c.l.b16 %v342
      %v485 = vunpack.c.l.b16 %v343
      %v486 = vunpack.c.l.b16 %v344
      %v487 = vunpack.c.l.b16 %v345
      %v488 = vunpack.c.l.b16 %v346
      %v489 = vunpack.c.l.b16 %v347
      %v490 = vunpack.c.l.b16 %v348
      %v491 = vunpack.c.l.b16 %v349
      %v492 = vunpack.c.l.b16 %v350
      %v493 = vunpack.c.l.b16 %v351
      %v494 = vunpack.c.l.b16 %v352
      %v495 = vunpack.c.l.b16 %v353
      %v496 = vunpack.c.l.b16 %v354
      %v497 = vunpack.c.l.b16 %v355
      %v498 = vunpack.c.l.b16 %v356
      %v499 = vunpack.c.l.b16 %v357
      %v500 = vunpack.c.l.b16 %v358
      %v501 = vunpack.c.l.b16 %v359
      %v502 = vunpack.c.l.b16 %v360
      %v503 = vpack.c.b16 %v440, %v439
      %v504 = vpack.c.b16 %v442, %v441
      %v505 = vpack.c.b16 %v444, %v443
      %v506 = vpack.c.b16 %v446, %v445
      %v507 = vpack.c.b16 %v448, %v447
      %v508 = vpack.c.b16 %v450, %v449
      %v509 = vpack.c.b16 %v452, %v451
      %v510 = vpack.c.b16 %v454, %v453
      %v511 = vpack.c.b16 %v456, %v455
      %v512 = vpack.c.b16 %v458, %v457
      %v513 = vpack.c.b16 %v460, %v459
      %v514 = vpack.c.b16 %v462, %v461
      %v515 = vpack.c.b16 %v464, %v463
      %v516 = vpack.c.b16 %v466, %v465
      %v517 = vpack.c.b16 %v468, %v467
      %v518 = vpack.c.b16 %v470, %v469
      %v519 = vpack.c.b16 %v472, %v471
      %v520 = vpack.c.b16 %v474, %v473
      %v521 = vpack.c.b16 %v476, %v475
      %v522 = vpack.c.b16 %v478, %v477
      %v523 = vpack.c.b16 %v480, %v479
      %v524 = vpack.c.b16 %v482, %v481
      %v525 = vpack.c.b16 %v484, %v483
      %v526 = vpack.c.b16 %v486, %v485
      %v527 = vpack.c.b16 %v488, %v487
      %v528 = vpack.c.b16 %v490, %v489
      %v529 = vpack.c.b16 %v492, %v491
      %v530 = vpack.c.b16 %v494, %v493
      %v531 = vpack.c.b16 %v496, %v495
      %v532 = vpack.c.b16 %v498, %v497
      %v533 = vpack.c.b16 %v500, %v499
      %v534 = vpack.c.b16 %v502, %v501
      %567 = vmatprep.subr.bf16.mxu0 0
      %568 = vmatpush1.bf16.msra.mxu0 %v503
      %569 = vmatprep.subr.bf16.mxu0 0
      %570 = vmatpush1.bf16.msra.mxu0 %v504
      %571 = vmatprep.subr.bf16.mxu0 0
      %572 = vmatpush1.bf16.msra.mxu0 %v505
      %573 = vmatprep.subr.bf16.mxu0 0
      %574 = vmatpush1.bf16.msra.mxu0 %v506
      %575 = vmatprep.subr.bf16.mxu0 0
      %576 = vmatpush1.bf16.msra.mxu0 %v507
      %577 = vmatprep.subr.bf16.mxu0 0
      %578 = vmatpush1.bf16.msra.mxu0 %v508
      %579 = vmatprep.subr.bf16.mxu0 0
      %580 = vmatpush1.bf16.msra.mxu0 %v509
      %581 = vmatprep.subr.bf16.mxu0 0
      %582 = vmatpush1.bf16.msra.mxu0 %v510
      %583 = vmatprep.subr.bf16.mxu0 0
      %584 = vmatpush1.bf16.msra.mxu0 %v511
      %585 = vmatprep.subr.bf16.mxu0 0
      %586 = vmatpush1.bf16.msra.mxu0 %v512
      %587 = vmatprep.subr.bf16.mxu0 0
      %588 = vmatpush1.bf16.msra.mxu0 %v513
      %589 = vmatprep.subr.bf16.mxu0 0
      %590 = vmatpush1.bf16.msra.mxu0 %v514
      %591 = vmatprep.subr.bf16.mxu0 0
      %592 = vmatpush1.bf16.msra.mxu0 %v515
      %593 = vmatprep.subr.bf16.mxu0 0
      %594 = vmatpush1.bf16.msra.mxu0 %v516
      %595 = vmatprep.subr.bf16.mxu0 0
      %596 = vmatpush1.bf16.msra.mxu0 %v517
      %597 = vmatprep.subr.bf16.mxu0 0
      %598 = vmatpush1.bf16.msra.mxu0 %v518
      %599 = vmatprep.mubr.bf16.mxu0 %v368
      %600 = vmatmul.mubr.bf16.gmra.mrb[0].mxu0 %v367
      %v601 = vpop.f32.mrb[0].mxu0
      %v602 = vadd.f32 0.0, %v601
      %v603 = vpop.f32.mrb[0].mxu0
      %v604 = vpop.f32.mrb[0].mxu0
      %v605 = vpop.f32.mrb[0].mxu0
      %606 = vdwg.mxu0
      %607 = vmatprep.subr.bf16.mxu0 0
      %608 = vmatpush1.bf16.msra.mxu0 %v519
      %609 = vmatprep.subr.bf16.mxu0 0
      %610 = vmatpush1.bf16.msra.mxu0 %v520
      %611 = vmatprep.subr.bf16.mxu0 0
      %612 = vmatpush1.bf16.msra.mxu0 %v521
      %613 = vmatprep.subr.bf16.mxu0 0
      %614 = vmatpush1.bf16.msra.mxu0 %v522
      %615 = vmatprep.subr.bf16.mxu0 0
      %616 = vmatpush1.bf16.msra.mxu0 %v523
      %617 = vmatprep.subr.bf16.mxu0 0
      %618 = vmatpush1.bf16.msra.mxu0 %v524
      %619 = vmatprep.subr.bf16.mxu0 0
      %620 = vmatpush1.bf16.msra.mxu0 %v525
      %621 = vmatprep.subr.bf16.mxu0 0
      %622 = vmatpush1.bf16.msra.mxu0 %v526
      %623 = vmatprep.subr.bf16.mxu0 0
      %624 = vmatpush1.bf16.msra.mxu0 %v527
      %625 = vmatprep.subr.bf16.mxu0 0
      %626 = vmatpush1.bf16.msra.mxu0 %v528
      %627 = vmatprep.subr.bf16.mxu0 0
      %628 = vmatpush1.bf16.msra.mxu0 %v529
      %629 = vmatprep.subr.bf16.mxu0 0
      %630 = vmatpush1.bf16.msra.mxu0 %v530
      %631 = vmatprep.subr.bf16.mxu0 0
      %632 = vmatpush1.bf16.msra.mxu0 %v531
      %633 = vmatprep.subr.bf16.mxu0 0
      %634 = vmatpush1.bf16.msra.mxu0 %v532
      %635 = vmatprep.subr.bf16.mxu0 0
      %636 = vmatpush1.bf16.msra.mxu0 %v533
      %637 = vmatprep.subr.bf16.mxu0 0
      %638 = vmatpush1.bf16.msra.mxu0 %v534
      %639 = vmatprep.mubr.bf16.mxu0 %v370
      %640 = vmatmul.mubr.bf16.gmra.mrb[0].mxu0 %v369
      %v641 = vpop.f32.mrb[0].mxu0
      %v642 = vadd.f32 %v602, %v641
      %v643 = vpop.f32.mrb[0].mxu0
      %v644 = vpop.f32.mrb[0].mxu0
      %v645 = vpop.f32.mrb[0].mxu0
      %646 = vdwg.mxu0
      %v647 = vadd.f32 %v294, %v642
      %648 = vst [vmem:[#allocation2] sm:$0xff] %v647
      %p649 = scmp.eq.s32.totalorder %s18, 1
      // Predicated region
      $region53: #{convblock5_forward.2} parent=47 // pred_check
        %p650 = pneg %p649
      $region54: #{convblock5_forward.2} parent=47 // pred_check_branch
        %652 = sbr.rel (%p650) target = $region56
      $region55: #{convblock5_forward.2} parent=47 // pred_region
        %v653 = vld [vmem:[%s2] sm:$0xf]
        %v654 = vld [vmem:[%s2 + $0x4] sm:$0xf]
        %v655 = vld [vmem:[%s2 + $0x8] sm:$0xf]
        %v656 = vld [vmem:[%s2 + $0xc] sm:$0xf]
        %v657 = vld [vmem:[%s2 + $0x10] sm:$0xf]
        %v658 = vld [vmem:[%s2 + $0x14] sm:$0xf]
        %v659 = vld [vmem:[%s2 + $0x18] sm:$0xf]
        %v660 = vld [vmem:[%s2 + $0x1c] sm:$0xf]
        %v661 = vld [vmem:[%s2 + $0x20] sm:$0xf]
        %v662 = vld [vmem:[%s2 + $0x24] sm:$0xf]
        %v663 = vld [vmem:[%s2 + $0x28] sm:$0xf]
        %v664 = vld [vmem:[%s2 + $0x2c] sm:$0xf]
        %v665 = vld [vmem:[%s2 + $0x30] sm:$0xf]
        %v666 = vld [vmem:[%s2 + $0x34] sm:$0xf]
        %v667 = vld [vmem:[%s2 + $0x38] sm:$0xf]
        %v668 = vld [vmem:[%s2 + $0x3c] sm:$0xf]
        %v669 = vld [vmem:[#allocation2] sm:$0xff]
        %v670 = vpack.c.bf16 %v669, %v669
        %v687 = vunpack.c.l.b16 %v653
        %v688 = vunpack.c.l.b16 %v654
        %v689 = vunpack.c.l.b16 %v655
        %v690 = vunpack.c.l.b16 %v656
        %v691 = vunpack.c.l.b16 %v657
        %v692 = vunpack.c.l.b16 %v658
        %v693 = vunpack.c.l.b16 %v659
        %v694 = vunpack.c.l.b16 %v660
        %v695 = vunpack.c.l.b16 %v661
        %v696 = vunpack.c.l.b16 %v662
        %v697 = vunpack.c.l.b16 %v663
        %v698 = vunpack.c.l.b16 %v664
        %v699 = vunpack.c.l.b16 %v665
        %v700 = vunpack.c.l.b16 %v666
        %v701 = vunpack.c.l.b16 %v667
        %v702 = vunpack.c.l.b16 %v668
        %v703 = vpack.c.b16 %v688, %v687
        %v704 = vpack.c.b16 %v690, %v689
        %v705 = vpack.c.b16 %v692, %v691
        %v706 = vpack.c.b16 %v694, %v693
        %v707 = vpack.c.b16 %v696, %v695
        %v708 = vpack.c.b16 %v698, %v697
        %v709 = vpack.c.b16 %v700, %v699
        %v710 = vpack.c.b16 %v702, %v701
        %719 = vmatprep.subr.bf16.mxu0 0
        %720 = vmatpush1.bf16.msra.mxu0 %v703
        %721 = vmatprep.subr.bf16.mxu0 0
        %722 = vmatpush1.bf16.msra.mxu0 %v704
        %723 = vmatprep.subr.bf16.mxu0 0
        %724 = vmatpush1.bf16.msra.mxu0 %v705
        %725 = vmatprep.subr.bf16.mxu0 0
        %726 = vmatpush1.bf16.msra.mxu0 %v706
        %727 = vmatprep.subr.bf16.mxu0 0
        %728 = vmatpush1.bf16.msra.mxu0 %v707
        %729 = vmatprep.subr.bf16.mxu0 0
        %730 = vmatpush1.bf16.msra.mxu0 %v708
        %731 = vmatprep.subr.bf16.mxu0 0
        %732 = vmatpush1.bf16.msra.mxu0 %v709
        %733 = vmatprep.subr.bf16.mxu0 0
        %734 = vmatpush1.bf16.msra.mxu0 %v710
        %735 = vmatprep.subr.bf16.mxu0 0
        %736 = vmatpush1.bf16.msra.mxu0 0
        %737 = vmatprep.subr.bf16.mxu0 0
        %738 = vmatpush1.bf16.msra.mxu0 0
        %739 = vmatprep.subr.bf16.mxu0 0
        %740 = vmatpush1.bf16.msra.mxu0 0
        %741 = vmatprep.subr.bf16.mxu0 0
        %742 = vmatpush1.bf16.msra.mxu0 0
        %743 = vmatprep.subr.bf16.mxu0 0
        %744 = vmatpush1.bf16.msra.mxu0 0
        %745 = vmatprep.subr.bf16.mxu0 0
        %746 = vmatpush1.bf16.msra.mxu0 0
        %747 = vmatprep.subr.bf16.mxu0 0
        %748 = vmatpush1.bf16.msra.mxu0 0
        %749 = vmatprep.subr.bf16.mxu0 0
        %750 = vmatpush1.bf16.msra.mxu0 0
        %751 = vmatprep.mubr.bf16.mxu0 0
        %752 = vmatmul.mubr.bf16.gmra.mrb[0].mxu0 %v670
        %v753 = vpop.f32.mrb[0].mxu0
        %v754 = vadd.f32 0.0, %v753
        %v755 = vpop.f32.mrb[0].mxu0
        %v756 = vpop.f32.mrb[0].mxu0
        %v757 = vpop.f32.mrb[0].mxu0
        %758 = vdwg.mxu0
        %v759 = vpack.c.bf16 %v754, %v669
        %v760 = vld [vmem:[%s3] sm:$0xf]
        %v761 = vld [vmem:[%s4] sm:$0xff]
        %763 = vset.pattern.permute.xlu0 0
        %764 = vperm.xlu0 %763, %v761
        %v765 = vpop.permute.xlu0 %764
        %vm767 = vcmask 130048
        %v769 = vsel %vm767, %v760, 0
        %771 = vmatprep.subr.bf16.mxu0 0
        %772 = vmatpush1.bf16.msra.mxu0 %v759
        %773 = vmatprep.subr.bf16.mxu0 0
        %774 = vmatpush1.bf16.msra.mxu0 0
        %775 = vmatprep.subr.bf16.mxu0 0
        %776 = vmatpush1.bf16.msra.mxu0 0
        %777 = vmatprep.subr.bf16.mxu0 0
        %778 = vmatpush1.bf16.msra.mxu0 0
        %779 = vmatprep.subr.bf16.mxu0 0
        %780 = vmatpush1.bf16.msra.mxu0 0
        %781 = vmatprep.subr.bf16.mxu0 0
        %782 = vmatpush1.bf16.msra.mxu0 0
        %783 = vmatprep.subr.bf16.mxu0 0
        %784 = vmatpush1.bf16.msra.mxu0 0
        %785 = vmatprep.subr.bf16.mxu0 0
        %786 = vmatpush1.bf16.msra.mxu0 0
        %787 = vmatprep.subr.bf16.mxu0 0
        %788 = vmatpush1.bf16.msra.mxu0 0
        %789 = vmatprep.subr.bf16.mxu0 0
        %790 = vmatpush1.bf16.msra.mxu0 0
        %791 = vmatprep.subr.bf16.mxu0 0
        %792 = vmatpush1.bf16.msra.mxu0 0
        %793 = vmatprep.subr.bf16.mxu0 0
        %794 = vmatpush1.bf16.msra.mxu0 0
        %795 = vmatprep.subr.bf16.mxu0 0
        %796 = vmatpush1.bf16.msra.mxu0 0
        %797 = vmatprep.subr.bf16.mxu0 0
        %798 = vmatpush1.bf16.msra.mxu0 0
        %799 = vmatprep.subr.bf16.mxu0 0
        %800 = vmatpush1.bf16.msra.mxu0 0
        %801 = vmatprep.subr.bf16.mxu0 0
        %802 = vmatpush1.bf16.msra.mxu0 0
        %803 = vmatprep.mubr.bf16.mxu0 0
        %804 = vmatmul.mubr.bf16.gmra.mrb[0].mxu0 %v769
        %v805 = vpop.f32.mrb[0].mxu0
        %v806 = vadd.f32 %v765, %v805
        %v807 = vpop.f32.mrb[0].mxu0
        %v808 = vpop.f32.mrb[0].mxu0
        %v809 = vpop.f32.mrb[0].mxu0
        %810 = vdwg.mxu0
        %v811 = vpack.c.bf16 %v806, %v806
        %812 = vmatprep.subr.bf16.mxu0 0
        %813 = vmatpush1.bf16.msra.mxu0 %v703
        %814 = vmatprep.subr.bf16.mxu0 0
        %815 = vmatpush1.bf16.msra.mxu0 %v704
        %816 = vmatprep.subr.bf16.mxu0 0
        %817 = vmatpush1.bf16.msra.mxu0 %v705
        %818 = vmatprep.subr.bf16.mxu0 0
        %819 = vmatpush1.bf16.msra.mxu0 %v706
        %820 = vmatprep.subr.bf16.mxu0 0
        %821 = vmatpush1.bf16.msra.mxu0 %v707
        %822 = vmatprep.subr.bf16.mxu0 0
        %823 = vmatpush1.bf16.msra.mxu0 %v708
        %824 = vmatprep.subr.bf16.mxu0 0
        %825 = vmatpush1.bf16.msra.mxu0 %v709
        %826 = vmatprep.subr.bf16.mxu0 0
        %827 = vmatpush1.bf16.msra.mxu0 %v710
        %828 = vmatprep.subr.bf16.mxu0 0
        %829 = vmatpush1.bf16.msra.mxu0 0
        %830 = vmatprep.subr.bf16.mxu0 0
        %831 = vmatpush1.bf16.msra.mxu0 0
        %832 = vmatprep.subr.bf16.mxu0 0
        %833 = vmatpush1.bf16.msra.mxu0 0
        %834 = vmatprep.subr.bf16.mxu0 0
        %835 = vmatpush1.bf16.msra.mxu0 0
        %836 = vmatprep.subr.bf16.mxu0 0
        %837 = vmatpush1.bf16.msra.mxu0 0
        %838 = vmatprep.subr.bf16.mxu0 0
        %839 = vmatpush1.bf16.msra.mxu0 0
        %840 = vmatprep.subr.bf16.mxu0 0
        %841 = vmatpush1.bf16.msra.mxu0 0
        %842 = vmatprep.subr.bf16.mxu0 0
        %843 = vmatpush1.bf16.msra.mxu0 0
        %844 = vmatprep.mubr.bf16.mxu0 0
        %845 = vmatmul.mubr.bf16.gmra.mrb[0].mxu0 %v811
        %v846 = vpop.f32.mrb[0].mxu0
        %v847 = vadd.f32 0.0, %v846
        %v848 = vpop.f32.mrb[0].mxu0
        %v849 = vpop.f32.mrb[0].mxu0
        %v850 = vpop.f32.mrb[0].mxu0
        %851 = vdwg.mxu0
        %v852 = vpack.c.bf16 %v847, %v806
        %v853 = vld [vmem:[%s5] sm:$0xf]
        %v854 = vld [vmem:[%s6] sm:$0xff]
        %856 = vset.pattern.permute.xlu0 0
        %857 = vperm.xlu0 %856, %v854
        %v858 = vpop.permute.xlu0 %857
        %v861 = vsel %vm767, %v853, 0
        %863 = vmatprep.subr.bf16.mxu0 0
        %864 = vmatpush1.bf16.msra.mxu0 %v852
        %865 = vmatprep.subr.bf16.mxu0 0
        %866 = vmatpush1.bf16.msra.mxu0 0
        %867 = vmatprep.subr.bf16.mxu0 0
        %868 = vmatpush1.bf16.msra.mxu0 0
        %869 = vmatprep.subr.bf16.mxu0 0
        %870 = vmatpush1.bf16.msra.mxu0 0
        %871 = vmatprep.subr.bf16.mxu0 0
        %872 = vmatpush1.bf16.msra.mxu0 0
        %873 = vmatprep.subr.bf16.mxu0 0
        %874 = vmatpush1.bf16.msra.mxu0 0
        %875 = vmatprep.subr.bf16.mxu0 0
        %876 = vmatpush1.bf16.msra.mxu0 0
        %877 = vmatprep.subr.bf16.mxu0 0
        %878 = vmatpush1.bf16.msra.mxu0 0
        %879 = vmatprep.subr.bf16.mxu0 0
        %880 = vmatpush1.bf16.msra.mxu0 0
        %881 = vmatprep.subr.bf16.mxu0 0
        %882 = vmatpush1.bf16.msra.mxu0 0
        %883 = vmatprep.subr.bf16.mxu0 0
        %884 = vmatpush1.bf16.msra.mxu0 0
        %885 = vmatprep.subr.bf16.mxu0 0
        %886 = vmatpush1.bf16.msra.mxu0 0
        %887 = vmatprep.subr.bf16.mxu0 0
        %888 = vmatpush1.bf16.msra.mxu0 0
        %889 = vmatprep.subr.bf16.mxu0 0
        %890 = vmatpush1.bf16.msra.mxu0 0
        %891 = vmatprep.subr.bf16.mxu0 0
        %892 = vmatpush1.bf16.msra.mxu0 0
        %893 = vmatprep.subr.bf16.mxu0 0
        %894 = vmatpush1.bf16.msra.mxu0 0
        %895 = vmatprep.mubr.bf16.mxu0 0
        %896 = vmatmul.mubr.bf16.gmra.mrb[0].mxu0 %v861
        %v897 = vpop.f32.mrb[0].mxu0
        %v898 = vadd.f32 %v858, %v897
        %v899 = vpop.f32.mrb[0].mxu0
        %v900 = vpop.f32.mrb[0].mxu0
        %v901 = vpop.f32.mrb[0].mxu0
        %902 = vdwg.mxu0
        %v903 = vpack.c.bf16 %v898, %v898
        %904 = vst [vmem:[%s7] sm:$0xf] %v903
      $region56: #{convblock5_forward.2} parent=47 // pred_fallthru
        _
      // Predicated region
      $region57: #{convblock5_forward.2} parent=47 // pred_check
        %p905 = pneg %p188
      $region58: #{convblock5_forward.2} parent=47 // pred_check_branch
        %907 = sbr.rel (%p905) target = $region60
      $region59: #{convblock5_forward.2} parent=47 // pred_region
        _
      $region60: #{convblock5_forward.2} parent=47 // pred_fallthru
        _
      // Predicated region
      $region61: #{convblock5_forward.2} parent=47 // pred_check
        %p908 = pneg %p188
      $region62: #{convblock5_forward.2} parent=47 // pred_check_branch
        %910 = sbr.rel (%p908) target = $region64
      $region63: #{convblock5_forward.2} parent=47 // pred_region
        _
      $region64: #{convblock5_forward.2} parent=47 // pred_fallthru
        _
    $region48: #{convblock5_forward.2} parent=5 // pred_fallthru
      _
    %p911 = scmp.le.s32.totalorder 2, %s13
    // Predicated region
    $region65: #{convblock5_forward.2} parent=5 // pred_check
      %p912 = pneg %p911
    $region66: #{convblock5_forward.2} parent=5 // pred_check_branch
      %914 = sbr.rel (%p912) target = $region68
    $region67: #{convblock5_forward.2} parent=5 // pred_region
      %s915 = ssub.s32 %s13, 2
    $region68: #{convblock5_forward.2} parent=5 // pred_fallthru
      _
  $region6: #{convblock5_forward.2} parent=0 // loop_footer
    %s17 = sadd.s32 1, %s13
  $region7: #{convblock5_forward.2} parent=0 // loop_footer_branch
    %12 = sbr.rel target = $region3
  $region8: #{convblock5_forward.2} parent=0 // loop_exit
    _

</llo_original>
